<compile_context>
chip_gen: v7x
topology: tpu7x:2x2x1
jax: 0.10.0
libtpu: 0.0.40
codegen_flags: <defaults>
</compile_context>

<pallas_src>
import functools

import jax
import jax.numpy as jnp
from jax.experimental import pallas as pl
from jax.experimental.pallas import tpu as pltpu


def _self_attention_kernel(x_ref, wbd_ref, re_ref, ex_ref, bias_ref, out_ref,
                           *, approx_recip):
    nd = wbd_ref.shape[1]            # N * D   (e.g. 256)
    n = re_ref.shape[1]              # instances per bag (e.g. 8)
    d = nd // n                      # out_len (e.g. 32)

    # --- ascend_dim for all N instances of every bag in one block-diag dot ---
    # x: (bt, N*in_len) @ (N*in_len, N*D) -> h: (bt, N*D), f32 accumulation.
    h = jnp.dot(x_ref[...], wbd_ref[...], preferred_element_type=jnp.float32)
    h = h + bias_ref[0:1, :]                         # + ba (tiled N times)
    h = jnp.maximum(h, 0.2 * h)                      # LeakyReLU(0.2), one VPU op

    # --- fused e-scores: column j of re = w1 (rows 0:D) + w2 (rows j*D:(j+1)*D)
    #     so e[b, j] = <h_b0, w1> + <h_bj, w2> in a single MXU dot. ---
    he = h.astype(re_ref.dtype)                      # bf16 on the fast path
    e = jnp.dot(he, re_ref[...], preferred_element_type=jnp.float32)  # (bt, N)
    e = e + bias_ref[1:2, 0:1]                       # + be

    # --- numerically stable softmax over the N instances (f32) ---
    e = e - jnp.max(e, axis=-1, keepdims=True)
    p = jnp.exp(e)
    denom = jnp.sum(p, axis=-1, keepdims=True)
    alpha = p * pl.reciprocal(denom, approx=approx_recip)             # (bt, N)

    # --- aggregated_ins = sum_j alpha_j * h_j, lane-dense ---
    # expand alpha across each instance's D lanes with a tiny 0/1 MXU dot,
    # multiply into h, then reduce the N lane-groups with log2(N) XLU rolls.
    alpha_l = jnp.dot(alpha, ex_ref[...], preferred_element_type=jnp.float32)  # (bt, N*D)
    s = alpha_l * h
    shift = d
    while shift < nd:                                 # static unroll: log2(N) steps
        s = s + pltpu.roll(s, shift=shift, axis=1)
        shift *= 2
    out_ref[...] = s[:, 0:d].astype(out_ref.dtype)    # every D-lane group holds the sum


def self_attention_batched(bags, Wa, ba, We, be, *, bag_tile=512, use_bf16=True):
    """bags: (num_bags, N, in_len); Wa: (in_len, D); ba: (D,); We: (1, 2D); be: (1,)
    -> (num_bags, D) where row b == SelfAttention.forward(bags[b])."""
    num_bags, n, in_len = bags.shape
    assert n > 0 and (n & (n - 1)) == 0, "instances per bag must be a power of two"
    d = Wa.shape[1]
    nd = n * d
    mm_dtype = jnp.bfloat16 if use_bf16 else jnp.float32

    # Block-diagonal ascend_dim weight: (N*in_len, N*D) with Wa on the diagonal.
    w_bd = jnp.kron(jnp.eye(n, dtype=jnp.float32), Wa.astype(jnp.float32)).astype(mm_dtype)

    # Fused e-score RHS (N*D, N): col j = w1 in rows 0:D  +  w2 in rows j*D:(j+1)*D.
    w1 = We[0, :d].astype(jnp.float32)
    w2 = We[0, d:].astype(jnp.float32)
    r_e = jnp.kron(jnp.eye(n, dtype=jnp.float32), w2.reshape(d, 1))
    r_e = r_e.at[:d, :].add(jnp.broadcast_to(w1[:, None], (d, n)))
    r_e = r_e.astype(mm_dtype)

    # alpha lane-expansion matrix (N, N*D): row j = ones over lanes j*D:(j+1)*D.
    expand = jnp.kron(jnp.eye(n, dtype=jnp.float32), jnp.ones((1, d), jnp.float32))

    # Packed bias buffer (2, N*D): row 0 = ba tiled N times, row 1 = be broadcast.
    bias = jnp.stack([jnp.tile(ba.astype(jnp.float32), n),
                      jnp.broadcast_to(be.astype(jnp.float32).reshape(1), (nd,))], axis=0)

    # Bags -> (num_bags, N*in_len): contiguous (free) reshape; bf16 halves HBM reads.
    x2d = bags.reshape(num_bags, n * in_len).astype(mm_dtype)

    # Effective tile: multiple of 8, no bigger than needed for small inputs.
    bag_tile = 8 * pl.cdiv(min(bag_tile, num_bags), 8)
    padded = bag_tile * pl.cdiv(num_bags, bag_tile)
    if padded != num_bags:
        x2d = jnp.pad(x2d, ((0, padded - num_bags), (0, 0)))

    const = lambda b: (0, 0)   # weights/bias resident in VMEM across the grid
    kernel = functools.partial(_self_attention_kernel, approx_recip=use_bf16)
    out = pl.pallas_call(
        kernel,
        out_shape=jax.ShapeDtypeStruct((padded, d), jnp.float32),
        grid=(padded // bag_tile,),
        in_specs=[
            pl.BlockSpec((bag_tile, n * in_len), lambda b: (b, 0)),
            pl.BlockSpec((n * in_len, nd), const),
            pl.BlockSpec((nd, n), const),
            pl.BlockSpec((n, nd), const),
            pl.BlockSpec((2, nd), const),
        ],
        out_specs=pl.BlockSpec((bag_tile, d), lambda b: (b, 0)),
        compiler_params=pltpu.CompilerParams(
            dimension_semantics=("parallel",),
            vmem_limit_bytes=32 * 1024 * 1024),
    )(x2d, w_bd, r_e, expand, bias)
    return out[:num_bags]


def self_attention(bag, Wa, ba, We, be, *, use_bf16=True):
    """Single bag (N, in_len) -> (1, D); identical to SelfAttention.forward.
    Parity/testing helper only — batch bags and use self_attention_batched in hot paths."""
    return self_attention_batched(bag[None], Wa, ba, We, be, bag_tile=8, use_bf16=use_bf16)


if __name__ == "__main__":
    key = jax.random.PRNGKey(0)
    num_bags, N, in_len, out_len = 300, 8, 16, 32
    k1, k2, k3, k4, k5 = jax.random.split(key, 5)

    bags = jax.random.normal(k1, (num_bags, N, in_len), jnp.float32)

    # Deterministic parameter init (PyTorch Linear-style uniform bounds).
    bound_a = 1.0 / (in_len ** 0.5)
    Wa = jax.random.uniform(k2, (in_len, out_len), jnp.float32, -bound_a, bound_a)
    ba = jax.random.uniform(k3, (out_len,), jnp.float32, -bound_a, bound_a)
    bound_e = 1.0 / ((2 * out_len) ** 0.5)
    We = jax.random.uniform(k4, (1, 2 * out_len), jnp.float32, -bound_e, bound_e)
    be = jax.random.uniform(k5, (1,), jnp.float32, -bound_e, bound_e)

    # Pure-JAX reference mirroring the PyTorch forward exactly (per bag).
    hi = jax.lax.Precision.HIGHEST

    def ref_one(bag):
        h = jnp.dot(bag, Wa, precision=hi) + ba
        h = jnp.where(h > 0, h, 0.2 * h)
        center = jnp.tile(h[0:1, :], (N, 1))
        sn = jnp.concatenate([center, h], axis=1)        # (N, 2D)
        e = jnp.dot(sn, We.T, precision=hi) + be          # (N, 1)
        alpha = jax.nn.softmax(e.reshape(1, N), axis=1)   # (1, N)
        return jnp.dot(alpha, h, precision=hi)[0]         # (D,)

    ref = jax.vmap(ref_one)(bags)                         # (num_bags, D)

    # f32 path (numerics faithful to the PyTorch module); exercises 3 grid steps + padding.
    out_f32 = jax.block_until_ready(
        self_attention_batched(bags, Wa, ba, We, be, bag_tile=128, use_bf16=False))
    assert out_f32.shape == (num_bags, out_len)
    assert jnp.allclose(out_f32, ref, atol=2e-3, rtol=2e-3), \
        float(jnp.max(jnp.abs(out_f32 - ref)))

    # Default fast path: bf16 MXU inputs + approx softmax reciprocal, one large tile.
    out_fast = jax.block_until_ready(self_attention_batched(bags, Wa, ba, We, be))
    assert out_fast.shape == (num_bags, out_len)
    assert jnp.allclose(out_fast, ref, atol=5e-2, rtol=5e-2), \
        float(jnp.max(jnp.abs(out_fast - ref)))

    # Single-bag call identical to SelfAttention.forward.
    out_one = jax.block_until_ready(self_attention(bags[0], Wa, ba, We, be, use_bf16=False))
    assert out_one.shape == (1, out_len)
    assert jnp.allclose(out_one, ref[0:1], atol=2e-3, rtol=2e-3)

    print("KERNEL_OK")
</pallas_src>

<mosaic_0001>
module attributes {stable_mosaic.version = 11 : i64} {
  func.func @_self_attention_kernel(%arg0: i32, %arg1: memref<128x128xf32, #tpu.memory_space<vmem>>, %arg2: memref<128x256xf32, #tpu.memory_space<vmem>>, %arg3: memref<256x8xf32, #tpu.memory_space<vmem>>, %arg4: memref<8x256xf32, #tpu.memory_space<vmem>>, %arg5: memref<2x256xf32, #tpu.memory_space<vmem>>, %arg6: memref<128x32xf32, #tpu.memory_space<vmem>>) attributes {dimension_semantics = [#tpu.dimension_semantics<parallel>], iteration_bounds = array<i64: 3>, scalar_prefetch = 0 : i64, scratch_operands = 0 : i64, tpu.core_type = #tpu.core_type<tc>, window_params = [{transform_indices = @transform_0, window_bounds = array<i64: 128, 128>}, {pipeline_mode = #tpu.pipeline_mode<synchronous>, transform_indices = @transform_1, window_bounds = array<i64: 128, 256>}, {pipeline_mode = #tpu.pipeline_mode<synchronous>, transform_indices = @transform_2, window_bounds = array<i64: 256, 8>}, {pipeline_mode = #tpu.pipeline_mode<synchronous>, transform_indices = @transform_3, window_bounds = array<i64: 8, 256>}, {pipeline_mode = #tpu.pipeline_mode<synchronous>, transform_indices = @transform_4, window_bounds = array<i64: 2, 256>}, {transform_indices = @transform_5, window_bounds = array<i64: 128, 32>}]} {
    %c0 = arith.constant 0 : index
    %c0_0 = arith.constant 0 : index
    %0 = vector.load %arg1[%c0, %c0_0] : memref<128x128xf32, #tpu.memory_space<vmem>>, vector<128x128xf32>
    %c0_1 = arith.constant 0 : index
    %c0_2 = arith.constant 0 : index
    %1 = vector.load %arg2[%c0_1, %c0_2] : memref<128x256xf32, #tpu.memory_space<vmem>>, vector<128x256xf32>
    %cst = arith.constant dense<0.000000e+00> : vector<128x256xf32>
    %2 = tpu.matmul %0, %1, %cst {dimension_numbers = #tpu.dot_dimension_numbers<[1], [0], [0], [1], [0, 0, 1, 1], [], []>} : vector<128x128xf32>, vector<128x256xf32>, vector<128x256xf32> -> vector<128x256xf32>
    %c0_3 = arith.constant 0 : index
    %c0_4 = arith.constant 0 : index
    %3 = vector.load %arg5[%c0_3, %c0_4] : memref<2x256xf32, #tpu.memory_space<vmem>>, vector<1x256xf32>
    %4 = vector.broadcast %3 : vector<1x256xf32> to vector<128x256xf32>
    %5 = arith.addf %2, %4 : vector<128x256xf32>
    %cst_5 = arith.constant 2.000000e-01 : f32
    %6 = vector.broadcast %cst_5 : f32 to vector<128x256xf32>
    %7 = arith.mulf %6, %5 : vector<128x256xf32>
    %8 = arith.maximumf %5, %7 : vector<128x256xf32>
    %c0_6 = arith.constant 0 : index
    %c0_7 = arith.constant 0 : index
    %9 = vector.load %arg3[%c0_6, %c0_7] : memref<256x8xf32, #tpu.memory_space<vmem>>, vector<256x8xf32>
    %cst_8 = arith.constant dense<0.000000e+00> : vector<128x8xf32>
    %10 = tpu.matmul %8, %9, %cst_8 {dimension_numbers = #tpu.dot_dimension_numbers<[1], [0], [0], [1], [0, 0, 1, 1], [], []>} : vector<128x256xf32>, vector<256x8xf32>, vector<128x8xf32> -> vector<128x8xf32>
    %c1 = arith.constant 1 : index
    %c0_9 = arith.constant 0 : index
    %11 = vector.load %arg5[%c1, %c0_9] : memref<2x256xf32, #tpu.memory_space<vmem>>, vector<1x1xf32>
    %12 = vector.broadcast %11 : vector<1x1xf32> to vector<128x8xf32>
    %13 = arith.addf %10, %12 : vector<128x8xf32>
    %cst_10 = arith.constant dense<0xFF800000> : vector<128xf32>
    %14 = vector.multi_reduction <maximumf>, %13, %cst_10 [1] : vector<128x8xf32> to vector<128xf32>
    %15 = vector.shape_cast %14 : vector<128xf32> to vector<128x1xf32>
    %16 = vector.broadcast %15 : vector<128x1xf32> to vector<128x8xf32>
    %17 = arith.subf %13, %16 : vector<128x8xf32>
    %18 = math.exp %17 : vector<128x8xf32>
    %cst_11 = arith.constant dense<0.000000e+00> : vector<128xf32>
    %19 = vector.multi_reduction <add>, %18, %cst_11 [1] : vector<128x8xf32> to vector<128xf32>
    %20 = vector.shape_cast %19 : vector<128xf32> to vector<128x1xf32>
    %21 = tpu.reciprocal %20 : vector<128x1xf32> -> vector<128x1xf32>
    %22 = vector.broadcast %21 : vector<128x1xf32> to vector<128x8xf32>
    %23 = arith.mulf %18, %22 : vector<128x8xf32>
    %c0_12 = arith.constant 0 : index
    %c0_13 = arith.constant 0 : index
    %24 = vector.load %arg4[%c0_12, %c0_13] : memref<8x256xf32, #tpu.memory_space<vmem>>, vector<8x256xf32>
    %cst_14 = arith.constant dense<0.000000e+00> : vector<128x256xf32>
    %25 = tpu.matmul %23, %24, %cst_14 {dimension_numbers = #tpu.dot_dimension_numbers<[1], [0], [0], [1], [0, 0, 1, 1], [], []>} : vector<128x8xf32>, vector<8x256xf32>, vector<128x256xf32> -> vector<128x256xf32>
    %26 = arith.mulf %25, %8 : vector<128x256xf32>
    %c32_i32 = arith.constant 32 : i32
    %27 = tpu.dynamic_rotate %26 by %c32_i32 dim 1 : vector<128x256xf32>, i32 -> vector<128x256xf32>
    %28 = arith.addf %26, %27 : vector<128x256xf32>
    %c64_i32 = arith.constant 64 : i32
    %29 = tpu.dynamic_rotate %28 by %c64_i32 dim 1 : vector<128x256xf32>, i32 -> vector<128x256xf32>
    %30 = arith.addf %28, %29 : vector<128x256xf32>
    %c128_i32 = arith.constant 128 : i32
    %31 = tpu.dynamic_rotate %30 by %c128_i32 dim 1 : vector<128x256xf32>, i32 -> vector<128x256xf32>
    %32 = arith.addf %30, %31 : vector<128x256xf32>
    %33 = vector.extract_strided_slice %32 {offsets = [0, 0], sizes = [128, 32], strides = [1, 1]} : vector<128x256xf32> to vector<128x32xf32>
    %c0_15 = arith.constant 0 : index
    %c0_16 = arith.constant 0 : index
    %34 = vector.load %arg6[%c0_15, %c0_16] : memref<128x32xf32, #tpu.memory_space<vmem>>, vector<128x32xf32>
    tpu.vector_store %arg6[%c0_15, %c0_16], %33 {strides = array<i32>} : memref<128x32xf32, #tpu.memory_space<vmem>>, vector<128x32xf32>,
    return
  }
  func.func @transform_0(%arg0: i32) -> (i32, i32) {
    %c0_i32 = arith.constant 0 : i32
    %c0_i32_0 = arith.constant 0 : i32
    return %arg0, %c0_i32 : i32, i32
  }
  func.func @transform_1(%arg0: i32) -> (i32, i32) {
    %c0_i32 = arith.constant 0 : i32
    %c0_i32_0 = arith.constant 0 : i32
    %c0_i32_1 = arith.constant 0 : i32
    return %c0_i32, %c0_i32_0 : i32, i32
  }
  func.func @transform_2(%arg0: i32) -> (i32, i32) {
    %c0_i32 = arith.constant 0 : i32
    %c0_i32_0 = arith.constant 0 : i32
    %c0_i32_1 = arith.constant 0 : i32
    return %c0_i32, %c0_i32_0 : i32, i32
  }
  func.func @transform_3(%arg0: i32) -> (i32, i32) {
    %c0_i32 = arith.constant 0 : i32
    %c0_i32_0 = arith.constant 0 : i32
    %c0_i32_1 = arith.constant 0 : i32
    return %c0_i32, %c0_i32_0 : i32, i32
  }
  func.func @transform_4(%arg0: i32) -> (i32, i32) {
    %c0_i32 = arith.constant 0 : i32
    %c0_i32_0 = arith.constant 0 : i32
    %c0_i32_1 = arith.constant 0 : i32
    return %c0_i32, %c0_i32_0 : i32, i32
  }
  func.func @transform_5(%arg0: i32) -> (i32, i32) {
    %c0_i32 = arith.constant 0 : i32
    %c0_i32_0 = arith.constant 0 : i32
    return %arg0, %c0_i32 : i32, i32
  }
}

</mosaic_0001>

<llo_original>
// kernel: tpu_custom_call.1
$region0: #{tpu_custom_call.1}
  #allocation0 [shape = 'u32[]', space=smem, size = 0x4, offset = 0x4, fixed_abs, tag = 'smem constant byte address 0x4 - core index']
  #allocation1 [shape = 'u32[144,128]{1,0:T(1,128)}', space=vmem, size = 0x12000, scoped, tag = 'internal scratch']
  %s0 = inlined_call_operand.hbm [shape: f32[384,128], index: 0, kind: input, shape index: {}]
  %s1 = inlined_call_operand.vmem [shape: f32[128,256], index: 1, kind: input, shape index: {}]
  %s2 = inlined_call_operand.vmem [shape: f32[256,8], index: 2, kind: input, shape index: {}]
  %s3 = inlined_call_operand.vmem [shape: f32[8,256], index: 3, kind: input, shape index: {}]
  %s4 = inlined_call_operand.vmem [shape: f32[2,256], index: 4, kind: input, shape index: {}]
  %s5 = inlined_call_operand.vmem [shape: f32[384,32], index: 5, kind: output, shape index: {}]
  %s6 = sld [smem:[#allocation0]]
  $region57: #{tpu_custom_call.1} parent=0
    _
  %s8 = ssub.s32 1, %s6
  %s9 = scalar_select 0, %s8, %s6
  $region1: #{tpu_custom_call.1} parent=0
    #allocation2 [shape = 'u8[131072]{0}', space=vmem, size = 0x20000, scoped, tag = 'input window, operand 0']
    #allocation3 [shape = 's32[2]{0}', space=sflag, size = 0x8, scoped, tag = 'scoped memory for tpu_custom_call.1']
    %10 = vsyncpa [#allocation3], 0
    %s11 = scalar_lea.sflag [#allocation3], 1
    %12 = vsyncpa %s11, 0
    loop: start=0, step=1, limit=5
    $region2: #{tpu_custom_call.1} parent=1 // loop_pre_header
      _
    $region3: #{tpu_custom_call.1} parent=1 // loop_header
      %s14 = sphi 0, %s18
      %p15 = scmp.ge.s32.totalorder %s14, 5
      %s24 = sphi 0, %s26
      %s27 = sphi 0, %s24
      %s28 = sphi 0, %s27
      %s44 = sphi 0, %s28
      %s48 = sphi 0, %s48
      %s50 = sphi 0, %s48
      %s51 = sphi 0, %s50
      %s65 = sphi 0, %s51
      %s69 = sphi 0, %s69
      %s71 = sphi 0, %s69
      %s72 = sphi 0, %s71
      %s86 = sphi 0, %s72
      %s90 = sphi 0, %s90
      %s92 = sphi 0, %s90
      %s93 = sphi 0, %s92
      %s107 = sphi 0, %s93
      %s111 = sphi 0, %s111
      %s113 = sphi 0, %s111
      %s114 = sphi 0, %s113
      %s128 = sphi 0, %s114
      %s134 = sphi 0, %s136
      %s137 = sphi 0, %s134
      %s138 = sphi 0, %s137
      %s154 = sphi 0, %s138
    $region4: #{tpu_custom_call.1} parent=1 // loop_header_branch
      %17 = sbr.rel (%p15) target = $region8
    $region5: #{tpu_custom_call.1} parent=1 // loop_body
      %s19 = ssub.s32 %s14, 1
      %s20 = ssub.s32 %s14, 2
      %s21 = sadd.s32 %s14, 1
      %s22 = ssub.s32 %s14, %s21
      %p23 = scmp.eq.s32.totalorder %s22, 0
      %s25 = sadd.s32 %s24, 1
      %s26 = scalar_select %p23, %s24, %s25
      %p29 = pneg %p23
      %p30 = scmp.eq.s32.totalorder %s14, 2
      %p31 = por %p29, %p30
      %p32 = scmp.ne.s32.totalorder %s24, %s27
      %p33 = scmp.eq.s32.totalorder %s14, 0
      %p34 = por %p32, %p33
      %p35 = scmp.ne.s32.totalorder %s24, %s27
      %p36 = scmp.eq.s32.totalorder %s19, 2
      %p37 = por %p35, %p36
      %p38 = scmp.ne.s32.totalorder %s27, %s28
      %p39 = scmp.eq.s32.totalorder %s19, 0
      %p40 = por %p38, %p39
      %p41 = scmp.ne.s32.totalorder %s27, %s28
      %p42 = scmp.eq.s32.totalorder %s20, 2
      %p43 = por %p41, %p42
      %p45 = scmp.ne.s32.totalorder %s28, %s44
      %p46 = scmp.eq.s32.totalorder %s20, 0
      %p47 = por %p45, %p46
      %s49 = sadd.s32 %s48, 1
      %p52 = scmp.eq.s32.totalorder %s14, 2
      %p53 = scmp.ne.s32.totalorder %s48, %s50
      %p54 = scmp.eq.s32.totalorder %s14, 0
      %p55 = por %p53, %p54
      %p56 = scmp.ne.s32.totalorder %s48, %s50
      %p57 = scmp.eq.s32.totalorder %s19, 2
      %p58 = por %p56, %p57
      %p59 = scmp.ne.s32.totalorder %s50, %s51
      %p60 = scmp.eq.s32.totalorder %s19, 0
      %p61 = por %p59, %p60
      %p62 = scmp.ne.s32.totalorder %s50, %s51
      %p63 = scmp.eq.s32.totalorder %s20, 2
      %p64 = por %p62, %p63
      %p66 = scmp.ne.s32.totalorder %s51, %s65
      %p67 = scmp.eq.s32.totalorder %s20, 0
      %p68 = por %p66, %p67
      %s70 = sadd.s32 %s69, 1
      %p73 = scmp.eq.s32.totalorder %s14, 2
      %p74 = scmp.ne.s32.totalorder %s69, %s71
      %p75 = scmp.eq.s32.totalorder %s14, 0
      %p76 = por %p74, %p75
      %p77 = scmp.ne.s32.totalorder %s69, %s71
      %p78 = scmp.eq.s32.totalorder %s19, 2
      %p79 = por %p77, %p78
      %p80 = scmp.ne.s32.totalorder %s71, %s72
      %p81 = scmp.eq.s32.totalorder %s19, 0
      %p82 = por %p80, %p81
      %p83 = scmp.ne.s32.totalorder %s71, %s72
      %p84 = scmp.eq.s32.totalorder %s20, 2
      %p85 = por %p83, %p84
      %p87 = scmp.ne.s32.totalorder %s72, %s86
      %p88 = scmp.eq.s32.totalorder %s20, 0
      %p89 = por %p87, %p88
      %s91 = sadd.s32 %s90, 1
      %p94 = scmp.eq.s32.totalorder %s14, 2
      %p95 = scmp.ne.s32.totalorder %s90, %s92
      %p96 = scmp.eq.s32.totalorder %s14, 0
      %p97 = por %p95, %p96
      %p98 = scmp.ne.s32.totalorder %s90, %s92
      %p99 = scmp.eq.s32.totalorder %s19, 2
      %p100 = por %p98, %p99
      %p101 = scmp.ne.s32.totalorder %s92, %s93
      %p102 = scmp.eq.s32.totalorder %s19, 0
      %p103 = por %p101, %p102
      %p104 = scmp.ne.s32.totalorder %s92, %s93
      %p105 = scmp.eq.s32.totalorder %s20, 2
      %p106 = por %p104, %p105
      %p108 = scmp.ne.s32.totalorder %s93, %s107
      %p109 = scmp.eq.s32.totalorder %s20, 0
      %p110 = por %p108, %p109
      %s112 = sadd.s32 %s111, 1
      %p115 = scmp.eq.s32.totalorder %s14, 2
      %p116 = scmp.ne.s32.totalorder %s111, %s113
      %p117 = scmp.eq.s32.totalorder %s14, 0
      %p118 = por %p116, %p117
      %p119 = scmp.ne.s32.totalorder %s111, %s113
      %p120 = scmp.eq.s32.totalorder %s19, 2
      %p121 = por %p119, %p120
      %p122 = scmp.ne.s32.totalorder %s113, %s114
      %p123 = scmp.eq.s32.totalorder %s19, 0
      %p124 = por %p122, %p123
      %p125 = scmp.ne.s32.totalorder %s113, %s114
      %p126 = scmp.eq.s32.totalorder %s20, 2
      %p127 = por %p125, %p126
      %p129 = scmp.ne.s32.totalorder %s114, %s128
      %p130 = scmp.eq.s32.totalorder %s20, 0
      %p131 = por %p129, %p130
      %s132 = ssub.s32 %s14, %s21
      %p133 = scmp.eq.s32.totalorder %s132, 0
      %s135 = sadd.s32 %s134, 1
      %s136 = scalar_select %p133, %s134, %s135
      %p139 = pneg %p133
      %p140 = scmp.eq.s32.totalorder %s14, 2
      %p141 = por %p139, %p140
      %p142 = scmp.ne.s32.totalorder %s134, %s137
      %p143 = scmp.eq.s32.totalorder %s14, 0
      %p144 = por %p142, %p143
      %p145 = scmp.ne.s32.totalorder %s134, %s137
      %p146 = scmp.eq.s32.totalorder %s19, 2
      %p147 = por %p145, %p146
      %p148 = scmp.ne.s32.totalorder %s137, %s138
      %p149 = scmp.eq.s32.totalorder %s19, 0
      %p150 = por %p148, %p149
      %p151 = scmp.ne.s32.totalorder %s137, %s138
      %p152 = scmp.eq.s32.totalorder %s20, 2
      %p153 = por %p151, %p152
      %p155 = scmp.ne.s32.totalorder %s138, %s154
      %p156 = scmp.eq.s32.totalorder %s20, 0
      %p157 = por %p155, %p156
      %p158 = scmp.le.s32.totalorder 1, %s14
      %p159 = scmp.lt.s32.totalorder %s14, 4
      %p160 = pnand %p158, %p159
      %p161 = pneg %p160
      // Predicated region
      $region9: #{tpu_custom_call.1} parent=5 // pred_check
        _
      $region10: #{tpu_custom_call.1} parent=5 // pred_check_branch
        %163 = sbr.rel (%p160) target = $region12
      $region11: #{tpu_custom_call.1} parent=5 // pred_region
        %s164 = ssub.s32 %s14, 1
        // Predicated region
        $region13: #{tpu_custom_call.1} parent=11 // pred_check
          %p165 = pneg %p61
        $region14: #{tpu_custom_call.1} parent=11 // pred_check_branch
          %167 = sbr.rel (%p165) target = $region16
        $region15: #{tpu_custom_call.1} parent=11 // pred_region
          _
        $region16: #{tpu_custom_call.1} parent=11 // pred_fallthru
          _
        // Predicated region
        $region17: #{tpu_custom_call.1} parent=11 // pred_check
          %p168 = pneg %p82
        $region18: #{tpu_custom_call.1} parent=11 // pred_check_branch
          %170 = sbr.rel (%p168) target = $region20
        $region19: #{tpu_custom_call.1} parent=11 // pred_region
          _
        $region20: #{tpu_custom_call.1} parent=11 // pred_fallthru
          _
        // Predicated region
        $region21: #{tpu_custom_call.1} parent=11 // pred_check
          %p171 = pneg %p103
        $region22: #{tpu_custom_call.1} parent=11 // pred_check_branch
          %173 = sbr.rel (%p171) target = $region24
        $region23: #{tpu_custom_call.1} parent=11 // pred_region
          _
        $region24: #{tpu_custom_call.1} parent=11 // pred_fallthru
          _
        // Predicated region
        $region25: #{tpu_custom_call.1} parent=11 // pred_check
          %p174 = pneg %p124
        $region26: #{tpu_custom_call.1} parent=11 // pred_check_branch
          %176 = sbr.rel (%p174) target = $region28
        $region27: #{tpu_custom_call.1} parent=11 // pred_region
          _
        $region28: #{tpu_custom_call.1} parent=11 // pred_fallthru
          _
      $region12: #{tpu_custom_call.1} parent=5 // pred_fallthru
        _
      %p177 = scmp.lt.s32.totalorder %s14, 3
      // Predicated region
      $region29: #{tpu_custom_call.1} parent=5 // pred_check
        %p178 = pneg %p177
      $region30: #{tpu_custom_call.1} parent=5 // pred_check_branch
        %180 = sbr.rel (%p178) target = $region32
      $region31: #{tpu_custom_call.1} parent=5 // pred_region
        // Predicated region
        $region33: #{tpu_custom_call.1} parent=31 // pred_check
          %p181 = pneg %p34
        $region34: #{tpu_custom_call.1} parent=31 // pred_check_branch
          %183 = sbr.rel (%p181) target = $region36
        $region35: #{tpu_custom_call.1} parent=31 // pred_region
          %s184 = sand.u32 %s24, 1
          %s185 = scalar_lea.sflag [#allocation3], %s184
          %s186 = sand.u32 %s24, 1
          %s187 = smul.addr %s186, 128
          %s188 = scalar_lea.vmem [#allocation2], %s187
          %s189 = smul.u32 16, %s14
          %s191 = ssub.s32 2048, 2048
          %192 = vsyncadd %s185, %s191
          %s193 = smul.addr %s189, 128
          %s194 = scalar_lea.hbm %s0, %s193
          %s195 = sshll.u32 %s188, 4
          %s196 = int_to_ptr.vmem [resolvable:$true] %s195
          %201 = dma.hbm_to_vmem [thread:$0]  %s194, 2048, %s196, %s185, 128, 128, 8
        $region36: #{tpu_custom_call.1} parent=31 // pred_fallthru
          _
      $region32: #{tpu_custom_call.1} parent=5 // pred_fallthru
        _
      %p202 = scmp.le.s32.totalorder 1, %s14
      %p203 = scmp.lt.s32.totalorder %s14, 4
      %p204 = pnand %p202, %p203
      %p205 = pneg %p204
      // Predicated region
      $region37: #{tpu_custom_call.1} parent=5 // pred_check
        _
      $region38: #{tpu_custom_call.1} parent=5 // pred_check_branch
        %207 = sbr.rel (%p204) target = $region40
      $region39: #{tpu_custom_call.1} parent=5 // pred_region
        %s208 = ssub.s32 %s14, 1
        %s209 = sand.u32 %s27, 1
        %s210 = scalar_lea.sflag [#allocation3], %s209
        %s211 = sand.u32 %s27, 1
        %s212 = smul.addr %s211, 128
        %s213 = scalar_lea.vmem [#allocation2], %s212
        // Predicated region
        $region41: #{tpu_custom_call.1} parent=39 // pred_check
          %p214 = pneg %p40
        $region42: #{tpu_custom_call.1} parent=39 // pred_check_branch
          %216 = sbr.rel (%p214) target = $region44
        $region43: #{tpu_custom_call.1} parent=39 // pred_region
          %217 = dma.done %s210, 2048
        $region44: #{tpu_custom_call.1} parent=39 // pred_fallthru
          _
        %s218 = sand.u32 %s27, 1
        %s219 = scalar_lea.sflag [#allocation3], %s218
        %s220 = sand.u32 %s27, 1
        %s221 = smul.addr %s220, 128
        %s222 = scalar_lea.vmem [#allocation2], %s221
        %p223 = pneg %p40
        %p224 = pneg %p37
        %p225 = pneg %p61
        %p226 = pneg %p58
        %p227 = pneg %p82
        %p228 = pneg %p79
        %p229 = pneg %p103
        %p230 = pneg %p100
        %p231 = pneg %p124
        %p232 = pneg %p121
        %p233 = pneg %p150
        %p234 = pneg %p147
        %s235 = smul.u32 16, %s19
        %p236 = scmp.lt.s32.totalorder %s235, 47
        %s237 = scalar_select %p236, %s235, 47
        %s238 = smul.addr %s237, 8
        %s239 = scalar_lea.vmem %s5, %s238
        %s240 = smul.u32 16, %s19
        %s241 = smul.u32 16, %s19
        %p242 = scmp.lt.s32.totalorder %s241, 47
        %s243 = scalar_select %p242, %s241, 47
        %s244 = smul.addr %s243, 8
        %s245 = scalar_lea.vmem %s5, %s244
        %s246 = smul.u32 16, %s19
        %v247 = vld [vmem:[%s213] sm:$0xff]
        %v248 = vld [vmem:[%s213 + $0x8] sm:$0xff]
        %v249 = vld [vmem:[%s213 + $0x10] sm:$0xff]
        %v250 = vld [vmem:[%s213 + $0x18] sm:$0xff]
        %v251 = vld [vmem:[%s213 + $0x20] sm:$0xff]
        %v252 = vld [vmem:[%s213 + $0x28] sm:$0xff]
        %v253 = vld [vmem:[%s213 + $0x30] sm:$0xff]
        %v254 = vld [vmem:[%s213 + $0x38] sm:$0xff]
        %v255 = vld [vmem:[%s213 + $0x40] sm:$0xff]
        %v256 = vld [vmem:[%s213 + $0x48] sm:$0xff]
        %v257 = vld [vmem:[%s213 + $0x50] sm:$0xff]
        %v258 = vld [vmem:[%s213 + $0x58] sm:$0xff]
        %v259 = vld [vmem:[%s213 + $0x60] sm:$0xff]
        %v260 = vld [vmem:[%s213 + $0x68] sm:$0xff]
        %v261 = vld [vmem:[%s213 + $0x70] sm:$0xff]
        %v262 = vld [vmem:[%s213 + $0x78] sm:$0xff]
        %v263 = vld [vmem:[%s1] sm:$0xff]
        %v264 = vld [vmem:[%s1 + $0x8] sm:$0xff]
        %v265 = vld [vmem:[%s1 + $0x10] sm:$0xff]
        %v266 = vld [vmem:[%s1 + $0x18] sm:$0xff]
        %v267 = vld [vmem:[%s1 + $0x20] sm:$0xff]
        %v268 = vld [vmem:[%s1 + $0x28] sm:$0xff]
        %v269 = vld [vmem:[%s1 + $0x30] sm:$0xff]
        %v270 = vld [vmem:[%s1 + $0x38] sm:$0xff]
        %v271 = vld [vmem:[%s1 + $0x40] sm:$0xff]
        %v272 = vld [vmem:[%s1 + $0x48] sm:$0xff]
        %v273 = vld [vmem:[%s1 + $0x50] sm:$0xff]
        %v274 = vld [vmem:[%s1 + $0x58] sm:$0xff]
        %v275 = vld [vmem:[%s1 + $0x60] sm:$0xff]
        %v276 = vld [vmem:[%s1 + $0x68] sm:$0xff]
        %v277 = vld [vmem:[%s1 + $0x70] sm:$0xff]
        %v278 = vld [vmem:[%s1 + $0x78] sm:$0xff]
        %v279 = vld [vmem:[%s1 + $0x80] sm:$0xff]
        %v280 = vld [vmem:[%s1 + $0x88] sm:$0xff]
        %v281 = vld [vmem:[%s1 + $0x90] sm:$0xff]
        %v282 = vld [vmem:[%s1 + $0x98] sm:$0xff]
        %v283 = vld [vmem:[%s1 + $0xa0] sm:$0xff]
        %v284 = vld [vmem:[%s1 + $0xa8] sm:$0xff]
        %v285 = vld [vmem:[%s1 + $0xb0] sm:$0xff]
        %v286 = vld [vmem:[%s1 + $0xb8] sm:$0xff]
        %v287 = vld [vmem:[%s1 + $0xc0] sm:$0xff]
        %v288 = vld [vmem:[%s1 + $0xc8] sm:$0xff]
        %v289 = vld [vmem:[%s1 + $0xd0] sm:$0xff]
        %v290 = vld [vmem:[%s1 + $0xd8] sm:$0xff]
        %v291 = vld [vmem:[%s1 + $0xe0] sm:$0xff]
        %v292 = vld [vmem:[%s1 + $0xe8] sm:$0xff]
        %v293 = vld [vmem:[%s1 + $0xf0] sm:$0xff]
        %v294 = vld [vmem:[%s1 + $0xf8] sm:$0xff]
        %v295 = vld [vmem:[%s4] ss:$2 sm:$0x3]
        %v297 = vlaneseq
        %v298 = vshrl.u32 %v297, 7
        %v299 = vsub.s32 0, %v298
        %v300 = vrot.slane %v295, %v299
        %v301 = vlaneseq
        %v302 = vshrl.u32 %v301, 7
        %v303 = vsub.s32 1, %v302
        %v304 = vrot.slane %v295, %v303
        %307 = vmatprep.subr.mxu0 %v264
        %308 = vmatpush1.msra.mxu0 %v263
        %309 = vmatprep.subr.mxu0 %v266
        %310 = vmatpush1.msra.mxu0 %v265
        %311 = vmatprep.subr.mxu0 %v268
        %312 = vmatpush1.msra.mxu0 %v267
        %313 = vmatprep.subr.mxu0 %v270
        %314 = vmatpush1.msra.mxu0 %v269
        %315 = vmatprep.subr.mxu0 %v272
        %316 = vmatpush1.msra.mxu0 %v271
        %317 = vmatprep.subr.mxu0 %v274
        %318 = vmatpush1.msra.mxu0 %v273
        %319 = vmatprep.subr.mxu0 %v276
        %320 = vmatpush1.msra.mxu0 %v275
        %321 = vmatprep.subr.mxu0 %v278
        %322 = vmatpush1.msra.mxu0 %v277
        %323 = vmatprep.subr.mxu0 %v280
        %324 = vmatpush1.msra.mxu0 %v279
        %325 = vmatprep.subr.mxu0 %v282
        %326 = vmatpush1.msra.mxu0 %v281
        %327 = vmatprep.subr.mxu0 %v284
        %328 = vmatpush1.msra.mxu0 %v283
        %329 = vmatprep.subr.mxu0 %v286
        %330 = vmatpush1.msra.mxu0 %v285
        %331 = vmatprep.subr.mxu0 %v288
        %332 = vmatpush1.msra.mxu0 %v287
        %333 = vmatprep.subr.mxu0 %v290
        %334 = vmatpush1.msra.mxu0 %v289
        %335 = vmatprep.subr.mxu0 %v292
        %336 = vmatpush1.msra.mxu0 %v291
        %337 = vmatprep.subr.mxu0 %v294
        %338 = vmatpush1.msra.mxu0 %v293
        %339 = vmatprep.subr.mxu0 0.0
        %340 = vmatpush1.msra.mxu0 0.0
        %341 = vmatprep.subr.mxu0 0.0
        %342 = vmatpush1.msra.mxu0 0.0
        %343 = vmatprep.subr.mxu0 0.0
        %344 = vmatpush1.msra.mxu0 0.0
        %345 = vmatprep.subr.mxu0 0.0
        %346 = vmatpush1.msra.mxu0 0.0
        %347 = vmatprep.subr.mxu0 0.0
        %348 = vmatpush1.msra.mxu0 0.0
        %349 = vmatprep.subr.mxu0 0.0
        %350 = vmatpush1.msra.mxu0 0.0
        %351 = vmatprep.subr.mxu0 0.0
        %352 = vmatpush1.msra.mxu0 0.0
        %353 = vmatprep.subr.mxu0 0.0
        %354 = vmatpush1.msra.mxu0 0.0
        %355 = vmatprep.subr.mxu0 0.0
        %356 = vmatpush1.msra.mxu0 0.0
        %357 = vmatprep.subr.mxu0 0.0
        %358 = vmatpush1.msra.mxu0 0.0
        %359 = vmatprep.subr.mxu0 0.0
        %360 = vmatpush1.msra.mxu0 0.0
        %361 = vmatprep.subr.mxu0 0.0
        %362 = vmatpush1.msra.mxu0 0.0
        %363 = vmatprep.subr.mxu0 0.0
        %364 = vmatpush1.msra.mxu0 0.0
        %365 = vmatprep.subr.mxu0 0.0
        %366 = vmatpush1.msra.mxu0 0.0
        %367 = vmatprep.subr.mxu0 0.0
        %368 = vmatpush1.msra.mxu0 0.0
        %369 = vmatprep.subr.mxu0 0.0
        %370 = vmatpush1.msra.mxu0 0.0
        %371 = vmatprep.mubr.f32.mxu0 0.0
        %372 = vmatmul.mubr.f32.gmra.mrb[0].mxu0 %v247
        %v373 = vpop.f32.mrb[0].mxu0
        %v374 = vadd.f32 %v300, %v373
        %v375 = vpop.f32.mrb[0].mxu0
        %v376 = vadd.f32 %v304, %v375
        %377 = vmatprep.mubr.f32.mxu0 0.0
        %378 = vmatmul.mubr.f32.gmra.mrb[0].mxu0 %v248
        %v379 = vpop.f32.mrb[0].mxu0
        %v380 = vadd.f32 %v300, %v379
        %v381 = vpop.f32.mrb[0].mxu0
        %v382 = vadd.f32 %v304, %v381
        %383 = vmatprep.mubr.f32.mxu0 0.0
        %384 = vmatmul.mubr.f32.gmra.mrb[0].mxu0 %v249
        %v385 = vpop.f32.mrb[0].mxu0
        %v386 = vadd.f32 %v300, %v385
        %v387 = vpop.f32.mrb[0].mxu0
        %v388 = vadd.f32 %v304, %v387
        %389 = vmatprep.mubr.f32.mxu0 0.0
        %390 = vmatmul.mubr.f32.gmra.mrb[0].mxu0 %v250
        %v391 = vpop.f32.mrb[0].mxu0
        %v392 = vadd.f32 %v300, %v391
        %v393 = vpop.f32.mrb[0].mxu0
        %v394 = vadd.f32 %v304, %v393
        %395 = vmatprep.mubr.f32.mxu0 0.0
        %396 = vmatmul.mubr.f32.gmra.mrb[0].mxu0 %v251
        %v397 = vpop.f32.mrb[0].mxu0
        %v398 = vadd.f32 %v300, %v397
        %v399 = vpop.f32.mrb[0].mxu0
        %v400 = vadd.f32 %v304, %v399
        %401 = vmatprep.mubr.f32.mxu0 0.0
        %402 = vmatmul.mubr.f32.gmra.mrb[0].mxu0 %v252
        %v403 = vpop.f32.mrb[0].mxu0
        %v404 = vadd.f32 %v300, %v403
        %v405 = vpop.f32.mrb[0].mxu0
        %v406 = vadd.f32 %v304, %v405
        %407 = vmatprep.mubr.f32.mxu0 0.0
        %408 = vmatmul.mubr.f32.gmra.mrb[0].mxu0 %v253
        %v409 = vpop.f32.mrb[0].mxu0
        %v410 = vadd.f32 %v300, %v409
        %v411 = vpop.f32.mrb[0].mxu0
        %v412 = vadd.f32 %v304, %v411
        %413 = vmatprep.mubr.f32.mxu0 0.0
        %414 = vmatmul.mubr.f32.gmra.mrb[0].mxu0 %v254
        %v415 = vpop.f32.mrb[0].mxu0
        %v416 = vadd.f32 %v300, %v415
        %v417 = vpop.f32.mrb[0].mxu0
        %v418 = vadd.f32 %v304, %v417
        %419 = vmatprep.mubr.f32.mxu0 0.0
        %420 = vmatmul.mubr.f32.gmra.mrb[0].mxu0 %v255
        %v421 = vpop.f32.mrb[0].mxu0
        %v422 = vadd.f32 %v300, %v421
        %v423 = vpop.f32.mrb[0].mxu0
        %v424 = vadd.f32 %v304, %v423
        %425 = vmatprep.mubr.f32.mxu0 0.0
        %426 = vmatmul.mubr.f32.gmra.mrb[0].mxu0 %v256
        %v427 = vpop.f32.mrb[0].mxu0
        %v428 = vadd.f32 %v300, %v427
        %v429 = vpop.f32.mrb[0].mxu0
        %v430 = vadd.f32 %v304, %v429
        %431 = vmatprep.mubr.f32.mxu0 0.0
        %432 = vmatmul.mubr.f32.gmra.mrb[0].mxu0 %v257
        %v433 = vpop.f32.mrb[0].mxu0
        %v434 = vadd.f32 %v300, %v433
        %v435 = vpop.f32.mrb[0].mxu0
        %v436 = vadd.f32 %v304, %v435
        %437 = vmatprep.mubr.f32.mxu0 0.0
        %438 = vmatmul.mubr.f32.gmra.mrb[0].mxu0 %v258
        %v439 = vpop.f32.mrb[0].mxu0
        %v440 = vadd.f32 %v300, %v439
        %v441 = vpop.f32.mrb[0].mxu0
        %v442 = vadd.f32 %v304, %v441
        %443 = vmatprep.mubr.f32.mxu0 0.0
        %444 = vmatmul.mubr.f32.gmra.mrb[0].mxu0 %v259
        %v445 = vpop.f32.mrb[0].mxu0
        %v446 = vadd.f32 %v300, %v445
        %v447 = vpop.f32.mrb[0].mxu0
        %v448 = vadd.f32 %v304, %v447
        %449 = vmatprep.mubr.f32.mxu0 0.0
        %450 = vmatmul.mubr.f32.gmra.mrb[0].mxu0 %v260
        %v451 = vpop.f32.mrb[0].mxu0
        %v452 = vadd.f32 %v300, %v451
        %v453 = vpop.f32.mrb[0].mxu0
        %v454 = vadd.f32 %v304, %v453
        %455 = vmatprep.mubr.f32.mxu0 0.0
        %456 = vmatmul.mubr.f32.gmra.mrb[0].mxu0 %v261
        %v457 = vpop.f32.mrb[0].mxu0
        %v458 = vadd.f32 %v300, %v457
        %v459 = vpop.f32.mrb[0].mxu0
        %v460 = vadd.f32 %v304, %v459
        %461 = vmatprep.mubr.f32.mxu0 0.0
        %462 = vmatmul.mubr.f32.gmra.mrb[0].mxu0 %v262
        %v463 = vpop.f32.mrb[0].mxu0
        %v464 = vadd.f32 %v300, %v463
        %v465 = vpop.f32.mrb[0].mxu0
        %v466 = vadd.f32 %v304, %v465
        %467 = vdwg.mxu0
        %v468 = vmul.f32 %v374, 0.2
        %v469 = vmul.f32 %v376, 0.2
        %v470 = vmul.f32 %v380, 0.2
        %v471 = vmul.f32 %v382, 0.2
        %v472 = vmul.f32 %v386, 0.2
        %v473 = vmul.f32 %v388, 0.2
        %v474 = vmul.f32 %v392, 0.2
        %v475 = vmul.f32 %v394, 0.2
        %v476 = vmul.f32 %v398, 0.2
        %v477 = vmul.f32 %v400, 0.2
        %v478 = vmul.f32 %v404, 0.2
        %v479 = vmul.f32 %v406, 0.2
        %v480 = vmul.f32 %v410, 0.2
        %v481 = vmul.f32 %v412, 0.2
        %v482 = vmul.f32 %v416, 0.2
        %v483 = vmul.f32 %v418, 0.2
        %v484 = vmul.f32 %v422, 0.2
        %v485 = vmul.f32 %v424, 0.2
        %v486 = vmul.f32 %v428, 0.2
        %v487 = vmul.f32 %v430, 0.2
        %v488 = vmul.f32 %v434, 0.2
        %v489 = vmul.f32 %v436, 0.2
        %v490 = vmul.f32 %v440, 0.2
        %v491 = vmul.f32 %v442, 0.2
        %v492 = vmul.f32 %v446, 0.2
        %v493 = vmul.f32 %v448, 0.2
        %v494 = vmul.f32 %v452, 0.2
        %v495 = vmul.f32 %v454, 0.2
        %v496 = vmul.f32 %v458, 0.2
        %v497 = vmul.f32 %v460, 0.2
        %v498 = vmul.f32 %v464, 0.2
        %v499 = vmul.f32 %v466, 0.2
        %v500 = vmax.f32 %v374, %v468
        %v501 = vmax.f32 %v376, %v469
        %v502 = vmax.f32 %v380, %v470
        %v503 = vmax.f32 %v382, %v471
        %v504 = vmax.f32 %v386, %v472
        %v505 = vmax.f32 %v388, %v473
        %v506 = vmax.f32 %v392, %v474
        %v507 = vmax.f32 %v394, %v475
        %v508 = vmax.f32 %v398, %v476
        %v509 = vmax.f32 %v400, %v477
        %v510 = vmax.f32 %v404, %v478
        %v511 = vmax.f32 %v406, %v479
        %v512 = vmax.f32 %v410, %v480
        %v513 = vmax.f32 %v412, %v481
        %v514 = vmax.f32 %v416, %v482
        %v515 = vmax.f32 %v418, %v483
        %v516 = vmax.f32 %v422, %v484
        %v517 = vmax.f32 %v424, %v485
        %v518 = vmax.f32 %v428, %v486
        %v519 = vmax.f32 %v430, %v487
        %v520 = vmax.f32 %v434, %v488
        %v521 = vmax.f32 %v436, %v489
        %v522 = vmax.f32 %v440, %v490
        %v523 = vmax.f32 %v442, %v491
        %v524 = vmax.f32 %v446, %v492
        %v525 = vmax.f32 %v448, %v493
        %v526 = vmax.f32 %v452, %v494
        %v527 = vmax.f32 %v454, %v495
        %v528 = vmax.f32 %v458, %v496
        %v529 = vmax.f32 %v460, %v497
        %v530 = vmax.f32 %v464, %v498
        %v531 = vmax.f32 %v466, %v499
        %v532 = vld [vmem:[%s2] sm:$0xff]
        %v533 = vld [vmem:[%s2 + $0x8] sm:$0xff]
        %v534 = vld [vmem:[%s2 + $0x10] sm:$0xff]
        %v535 = vld [vmem:[%s2 + $0x18] sm:$0xff]
        %v536 = vld [vmem:[%s2 + $0x20] sm:$0xff]
        %v537 = vld [vmem:[%s2 + $0x28] sm:$0xff]
        %v538 = vld [vmem:[%s2 + $0x30] sm:$0xff]
        %v539 = vld [vmem:[%s2 + $0x38] sm:$0xff]
        %v540 = vld [vmem:[%s2 + $0x40] sm:$0xff]
        %v541 = vld [vmem:[%s2 + $0x48] sm:$0xff]
        %v542 = vld [vmem:[%s2 + $0x50] sm:$0xff]
        %v543 = vld [vmem:[%s2 + $0x58] sm:$0xff]
        %v544 = vld [vmem:[%s2 + $0x60] sm:$0xff]
        %v545 = vld [vmem:[%s2 + $0x68] sm:$0xff]
        %v546 = vld [vmem:[%s2 + $0x70] sm:$0xff]
        %v547 = vld [vmem:[%s2 + $0x78] sm:$0xff]
        %v548 = vld [vmem:[%s2 + $0x80] sm:$0xff]
        %v549 = vld [vmem:[%s2 + $0x88] sm:$0xff]
        %v550 = vld [vmem:[%s2 + $0x90] sm:$0xff]
        %v551 = vld [vmem:[%s2 + $0x98] sm:$0xff]
        %v552 = vld [vmem:[%s2 + $0xa0] sm:$0xff]
        %v553 = vld [vmem:[%s2 + $0xa8] sm:$0xff]
        %v554 = vld [vmem:[%s2 + $0xb0] sm:$0xff]
        %v555 = vld [vmem:[%s2 + $0xb8] sm:$0xff]
        %v556 = vld [vmem:[%s2 + $0xc0] sm:$0xff]
        %v557 = vld [vmem:[%s2 + $0xc8] sm:$0xff]
        %v558 = vld [vmem:[%s2 + $0xd0] sm:$0xff]
        %v559 = vld [vmem:[%s2 + $0xd8] sm:$0xff]
        %v560 = vld [vmem:[%s2 + $0xe0] sm:$0xff]
        %v561 = vld [vmem:[%s2 + $0xe8] sm:$0xff]
        %v562 = vld [vmem:[%s2 + $0xf0] sm:$0xff]
        %v563 = vld [vmem:[%s2 + $0xf8] sm:$0xff]
        %v564 = vld [vmem:[%s4 + $0x1] sm:$0x1]
        %s566 = vtos %v564
        %v567 = vstv %s566
        %569 = vmatprep.subr.mxu0 0.0
        %570 = vmatpush1.msra.mxu0 %v532
        %571 = vmatprep.subr.mxu0 0.0
        %572 = vmatpush1.msra.mxu0 %v533
        %573 = vmatprep.subr.mxu0 0.0
        %574 = vmatpush1.msra.mxu0 %v534
        %575 = vmatprep.subr.mxu0 0.0
        %576 = vmatpush1.msra.mxu0 %v535
        %577 = vmatprep.subr.mxu0 0.0
        %578 = vmatpush1.msra.mxu0 %v536
        %579 = vmatprep.subr.mxu0 0.0
        %580 = vmatpush1.msra.mxu0 %v537
        %581 = vmatprep.subr.mxu0 0.0
        %582 = vmatpush1.msra.mxu0 %v538
        %583 = vmatprep.subr.mxu0 0.0
        %584 = vmatpush1.msra.mxu0 %v539
        %585 = vmatprep.subr.mxu0 0.0
        %586 = vmatpush1.msra.mxu0 %v540
        %587 = vmatprep.subr.mxu0 0.0
        %588 = vmatpush1.msra.mxu0 %v541
        %589 = vmatprep.subr.mxu0 0.0
        %590 = vmatpush1.msra.mxu0 %v542
        %591 = vmatprep.subr.mxu0 0.0
        %592 = vmatpush1.msra.mxu0 %v543
        %593 = vmatprep.subr.mxu0 0.0
        %594 = vmatpush1.msra.mxu0 %v544
        %595 = vmatprep.subr.mxu0 0.0
        %596 = vmatpush1.msra.mxu0 %v545
        %597 = vmatprep.subr.mxu0 0.0
        %598 = vmatpush1.msra.mxu0 %v546
        %599 = vmatprep.subr.mxu0 0.0
        %600 = vmatpush1.msra.mxu0 %v547
        %601 = vmatprep.subr.mxu0 0.0
        %602 = vmatpush1.msra.mxu0 %v548
        %603 = vmatprep.subr.mxu0 0.0
        %604 = vmatpush1.msra.mxu0 %v549
        %605 = vmatprep.subr.mxu0 0.0
        %606 = vmatpush1.msra.mxu0 %v550
        %607 = vmatprep.subr.mxu0 0.0
        %608 = vmatpush1.msra.mxu0 %v551
        %609 = vmatprep.subr.mxu0 0.0
        %610 = vmatpush1.msra.mxu0 %v552
        %611 = vmatprep.subr.mxu0 0.0
        %612 = vmatpush1.msra.mxu0 %v553
        %613 = vmatprep.subr.mxu0 0.0
        %614 = vmatpush1.msra.mxu0 %v554
        %615 = vmatprep.subr.mxu0 0.0
        %616 = vmatpush1.msra.mxu0 %v555
        %617 = vmatprep.subr.mxu0 0.0
        %618 = vmatpush1.msra.mxu0 %v556
        %619 = vmatprep.subr.mxu0 0.0
        %620 = vmatpush1.msra.mxu0 %v557
        %621 = vmatprep.subr.mxu0 0.0
        %622 = vmatpush1.msra.mxu0 %v558
        %623 = vmatprep.subr.mxu0 0.0
        %624 = vmatpush1.msra.mxu0 %v559
        %625 = vmatprep.subr.mxu0 0.0
        %626 = vmatpush1.msra.mxu0 %v560
        %627 = vmatprep.subr.mxu0 0.0
        %628 = vmatpush1.msra.mxu0 %v561
        %629 = vmatprep.subr.mxu0 0.0
        %630 = vmatpush1.msra.mxu0 %v562
        %631 = vmatprep.subr.mxu0 0.0
        %632 = vmatpush1.msra.mxu0 %v563
        %633 = vmatprep.mubr.f32.mxu0 %v501
        %634 = vmatmul.mubr.f32.gmra.mrb[0].mxu0 %v500
        %v635 = vpop.f32.mrb[0].mxu0
        %v636 = vadd.f32 %v567, %v635
        %v637 = vpop.f32.mrb[0].mxu0
        %638 = vmatprep.mubr.f32.mxu0 %v503
        %639 = vmatmul.mubr.f32.gmra.mrb[0].mxu0 %v502
        %v640 = vpop.f32.mrb[0].mxu0
        %v641 = vadd.f32 %v567, %v640
        %v642 = vpop.f32.mrb[0].mxu0
        %643 = vmatprep.mubr.f32.mxu0 %v505
        %644 = vmatmul.mubr.f32.gmra.mrb[0].mxu0 %v504
        %v645 = vpop.f32.mrb[0].mxu0
        %v646 = vadd.f32 %v567, %v645
        %v647 = vpop.f32.mrb[0].mxu0
        %648 = vmatprep.mubr.f32.mxu0 %v507
        %649 = vmatmul.mubr.f32.gmra.mrb[0].mxu0 %v506
        %v650 = vpop.f32.mrb[0].mxu0
        %v651 = vadd.f32 %v567, %v650
        %v652 = vpop.f32.mrb[0].mxu0
        %653 = vmatprep.mubr.f32.mxu0 %v509
        %654 = vmatmul.mubr.f32.gmra.mrb[0].mxu0 %v508
        %v655 = vpop.f32.mrb[0].mxu0
        %v656 = vadd.f32 %v567, %v655
        %v657 = vpop.f32.mrb[0].mxu0
        %658 = vmatprep.mubr.f32.mxu0 %v511
        %659 = vmatmul.mubr.f32.gmra.mrb[0].mxu0 %v510
        %v660 = vpop.f32.mrb[0].mxu0
        %v661 = vadd.f32 %v567, %v660
        %v662 = vpop.f32.mrb[0].mxu0
        %663 = vmatprep.mubr.f32.mxu0 %v513
        %664 = vmatmul.mubr.f32.gmra.mrb[0].mxu0 %v512
        %v665 = vpop.f32.mrb[0].mxu0
        %v666 = vadd.f32 %v567, %v665
        %v667 = vpop.f32.mrb[0].mxu0
        %668 = vmatprep.mubr.f32.mxu0 %v515
        %669 = vmatmul.mubr.f32.gmra.mrb[0].mxu0 %v514
        %v670 = vpop.f32.mrb[0].mxu0
        %v671 = vadd.f32 %v567, %v670
        %v672 = vpop.f32.mrb[0].mxu0
        %673 = vmatprep.mubr.f32.mxu0 %v517
        %674 = vmatmul.mubr.f32.gmra.mrb[0].mxu0 %v516
        %v675 = vpop.f32.mrb[0].mxu0
        %v676 = vadd.f32 %v567, %v675
        %v677 = vpop.f32.mrb[0].mxu0
        %678 = vmatprep.mubr.f32.mxu0 %v519
        %679 = vmatmul.mubr.f32.gmra.mrb[0].mxu0 %v518
        %v680 = vpop.f32.mrb[0].mxu0
        %v681 = vadd.f32 %v567, %v680
        %v682 = vpop.f32.mrb[0].mxu0
        %683 = vmatprep.mubr.f32.mxu0 %v521
        %684 = vmatmul.mubr.f32.gmra.mrb[0].mxu0 %v520
        %v685 = vpop.f32.mrb[0].mxu0
        %v686 = vadd.f32 %v567, %v685
        %v687 = vpop.f32.mrb[0].mxu0
        %688 = vmatprep.mubr.f32.mxu0 %v523
        %689 = vmatmul.mubr.f32.gmra.mrb[0].mxu0 %v522
        %v690 = vpop.f32.mrb[0].mxu0
        %v691 = vadd.f32 %v567, %v690
        %v692 = vpop.f32.mrb[0].mxu0
        %693 = vmatprep.mubr.f32.mxu0 %v525
        %694 = vmatmul.mubr.f32.gmra.mrb[0].mxu0 %v524
        %v695 = vpop.f32.mrb[0].mxu0
        %v696 = vadd.f32 %v567, %v695
        %v697 = vpop.f32.mrb[0].mxu0
        %698 = vmatprep.mubr.f32.mxu0 %v527
        %699 = vmatmul.mubr.f32.gmra.mrb[0].mxu0 %v526
        %v700 = vpop.f32.mrb[0].mxu0
        %v701 = vadd.f32 %v567, %v700
        %v702 = vpop.f32.mrb[0].mxu0
        %703 = vmatprep.mubr.f32.mxu0 %v529
        %704 = vmatmul.mubr.f32.gmra.mrb[0].mxu0 %v528
        %v705 = vpop.f32.mrb[0].mxu0
        %v706 = vadd.f32 %v567, %v705
        %v707 = vpop.f32.mrb[0].mxu0
        %708 = vmatprep.mubr.f32.mxu0 %v531
        %709 = vmatmul.mubr.f32.gmra.mrb[0].mxu0 %v530
        %v710 = vpop.f32.mrb[0].mxu0
        %v711 = vadd.f32 %v567, %v710
        %v712 = vpop.f32.mrb[0].mxu0
        %713 = vdwg.mxu0
        %vm714 = vcmask 64512
        %v715 = vsel %vm714, %v636, -inf
        %716 = vmax.xlane.f32.xlu0 %v715
        %v717 = vpop.xlane.xlu0 %716
        %v718 = vsel %vm714, %v641, -inf
        %719 = vmax.xlane.f32.xlu0 %v718
        %v720 = vpop.xlane.xlu0 %719
        %v721 = vsel %vm714, %v646, -inf
        %722 = vmax.xlane.f32.xlu0 %v721
        %v723 = vpop.xlane.xlu0 %722
        %v724 = vsel %vm714, %v651, -inf
        %725 = vmax.xlane.f32.xlu0 %v724
        %v726 = vpop.xlane.xlu0 %725
        %v727 = vsel %vm714, %v656, -inf
        %728 = vmax.xlane.f32.xlu0 %v727
        %v729 = vpop.xlane.xlu0 %728
        %v730 = vsel %vm714, %v661, -inf
        %731 = vmax.xlane.f32.xlu0 %v730
        %v732 = vpop.xlane.xlu0 %731
        %v733 = vsel %vm714, %v666, -inf
        %734 = vmax.xlane.f32.xlu0 %v733
        %v735 = vpop.xlane.xlu0 %734
        %v736 = vsel %vm714, %v671, -inf
        %737 = vmax.xlane.f32.xlu0 %v736
        %v738 = vpop.xlane.xlu0 %737
        %v739 = vsel %vm714, %v676, -inf
        %740 = vmax.xlane.f32.xlu0 %v739
        %v741 = vpop.xlane.xlu0 %740
        %v742 = vsel %vm714, %v681, -inf
        %743 = vmax.xlane.f32.xlu0 %v742
        %v744 = vpop.xlane.xlu0 %743
        %v745 = vsel %vm714, %v686, -inf
        %746 = vmax.xlane.f32.xlu0 %v745
        %v747 = vpop.xlane.xlu0 %746
        %v748 = vsel %vm714, %v691, -inf
        %749 = vmax.xlane.f32.xlu0 %v748
        %v750 = vpop.xlane.xlu0 %749
        %v751 = vsel %vm714, %v696, -inf
        %752 = vmax.xlane.f32.xlu0 %v751
        %v753 = vpop.xlane.xlu0 %752
        %v754 = vsel %vm714, %v701, -inf
        %755 = vmax.xlane.f32.xlu0 %v754
        %v756 = vpop.xlane.xlu0 %755
        %v757 = vsel %vm714, %v706, -inf
        %758 = vmax.xlane.f32.xlu0 %v757
        %v759 = vpop.xlane.xlu0 %758
        %v760 = vsel %vm714, %v711, -inf
        %761 = vmax.xlane.f32.xlu0 %v760
        %v762 = vpop.xlane.xlu0 %761
        %v763 = vsub.f32 %v636, %v717
        %v764 = vsub.f32 %v641, %v720
        %v765 = vsub.f32 %v646, %v723
        %v766 = vsub.f32 %v651, %v726
        %v767 = vsub.f32 %v656, %v729
        %v768 = vsub.f32 %v661, %v732
        %v769 = vsub.f32 %v666, %v735
        %v770 = vsub.f32 %v671, %v738
        %v771 = vsub.f32 %v676, %v741
        %v772 = vsub.f32 %v681, %v744
        %v773 = vsub.f32 %v686, %v747
        %v774 = vsub.f32 %v691, %v750
        %v775 = vsub.f32 %v696, %v753
        %v776 = vsub.f32 %v701, %v756
        %v777 = vsub.f32 %v706, %v759
        %v778 = vsub.f32 %v711, %v762
        %v779 = vmul.f32 %v763, 1.442695
        %v780 = vpow.pop %v779
        %v781 = vmul.f32 %v764, 1.442695
        %v782 = vpow.pop %v781
        %v783 = vmul.f32 %v765, 1.442695
        %v784 = vpow.pop %v783
        %v785 = vmul.f32 %v766, 1.442695
        %v786 = vpow.pop %v785
        %v787 = vmul.f32 %v767, 1.442695
        %v788 = vpow.pop %v787
        %v789 = vmul.f32 %v768, 1.442695
        %v790 = vpow.pop %v789
        %v791 = vmul.f32 %v769, 1.442695
        %v792 = vpow.pop %v791
        %v793 = vmul.f32 %v770, 1.442695
        %v794 = vpow.pop %v793
        %v795 = vmul.f32 %v771, 1.442695
        %v796 = vpow.pop %v795
        %v797 = vmul.f32 %v772, 1.442695
        %v798 = vpow.pop %v797
        %v799 = vmul.f32 %v773, 1.442695
        %v800 = vpow.pop %v799
        %v801 = vmul.f32 %v774, 1.442695
        %v802 = vpow.pop %v801
        %v803 = vmul.f32 %v775, 1.442695
        %v804 = vpow.pop %v803
        %v805 = vmul.f32 %v776, 1.442695
        %v806 = vpow.pop %v805
        %v807 = vmul.f32 %v777, 1.442695
        %v808 = vpow.pop %v807
        %v809 = vmul.f32 %v778, 1.442695
        %v810 = vpow.pop %v809
        %v811 = vsel %vm714, %v780, 0.0
        %812 = vadd.xlane.f32.xlu0 %v811
        %v813 = vpop.xlane.xlu0 %812
        %v814 = vsel %vm714, %v782, 0.0
        %815 = vadd.xlane.f32.xlu0 %v814
        %v816 = vpop.xlane.xlu0 %815
        %v817 = vsel %vm714, %v784, 0.0
        %818 = vadd.xlane.f32.xlu0 %v817
        %v819 = vpop.xlane.xlu0 %818
        %v820 = vsel %vm714, %v786, 0.0
        %821 = vadd.xlane.f32.xlu0 %v820
        %v822 = vpop.xlane.xlu0 %821
        %v823 = vsel %vm714, %v788, 0.0
        %824 = vadd.xlane.f32.xlu0 %v823
        %v825 = vpop.xlane.xlu0 %824
        %v826 = vsel %vm714, %v790, 0.0
        %827 = vadd.xlane.f32.xlu0 %v826
        %v828 = vpop.xlane.xlu0 %827
        %v829 = vsel %vm714, %v792, 0.0
        %830 = vadd.xlane.f32.xlu0 %v829
        %v831 = vpop.xlane.xlu0 %830
        %v832 = vsel %vm714, %v794, 0.0
        %833 = vadd.xlane.f32.xlu0 %v832
        %v834 = vpop.xlane.xlu0 %833
        %v835 = vsel %vm714, %v796, 0.0
        %836 = vadd.xlane.f32.xlu0 %v835
        %v837 = vpop.xlane.xlu0 %836
        %v838 = vsel %vm714, %v798, 0.0
        %839 = vadd.xlane.f32.xlu0 %v838
        %v840 = vpop.xlane.xlu0 %839
        %v841 = vsel %vm714, %v800, 0.0
        %842 = vadd.xlane.f32.xlu0 %v841
        %v843 = vpop.xlane.xlu0 %842
        %v844 = vsel %vm714, %v802, 0.0
        %845 = vadd.xlane.f32.xlu0 %v844
        %v846 = vpop.xlane.xlu0 %845
        %v847 = vsel %vm714, %v804, 0.0
        %848 = vadd.xlane.f32.xlu0 %v847
        %v849 = vpop.xlane.xlu0 %848
        %v850 = vsel %vm714, %v806, 0.0
        %851 = vadd.xlane.f32.xlu0 %v850
        %v852 = vpop.xlane.xlu0 %851
        %v853 = vsel %vm714, %v808, 0.0
        %854 = vadd.xlane.f32.xlu0 %v853
        %v855 = vpop.xlane.xlu0 %854
        %v856 = vsel %vm714, %v810, 0.0
        %857 = vadd.xlane.f32.xlu0 %v856
        %v858 = vpop.xlane.xlu0 %857
        %v859 = vrcp.pop %v813
        %v860 = vrcp.pop %v816
        %v861 = vrcp.pop %v819
        %v862 = vrcp.pop %v822
        %v863 = vrcp.pop %v825
        %v864 = vrcp.pop %v828
        %v865 = vrcp.pop %v831
        %v866 = vrcp.pop %v834
        %v867 = vrcp.pop %v837
        %v868 = vrcp.pop %v840
        %v869 = vrcp.pop %v843
        %v870 = vrcp.pop %v846
        %v871 = vrcp.pop %v849
        %v872 = vrcp.pop %v852
        %v873 = vrcp.pop %v855
        %v874 = vrcp.pop %v858
        %v875 = vmul.f32 %v780, %v859
        %v876 = vmul.f32 %v782, %v860
        %v877 = vmul.f32 %v784, %v861
        %v878 = vmul.f32 %v786, %v862
        %v879 = vmul.f32 %v788, %v863
        %v880 = vmul.f32 %v790, %v864
        %v881 = vmul.f32 %v792, %v865
        %v882 = vmul.f32 %v794, %v866
        %v883 = vmul.f32 %v796, %v867
        %v884 = vmul.f32 %v798, %v868
        %v885 = vmul.f32 %v800, %v869
        %v886 = vmul.f32 %v802, %v870
        %v887 = vmul.f32 %v804, %v871
        %v888 = vmul.f32 %v806, %v872
        %v889 = vmul.f32 %v808, %v873
        %v890 = vmul.f32 %v810, %v874
        %v891 = vld [vmem:[%s3] sm:$0xff]
        %v892 = vld [vmem:[%s3 + $0x8] sm:$0xff]
        %v894 = vsel %vm714, %v875, 0
        %v897 = vsel %vm714, %v876, 0
        %v900 = vsel %vm714, %v877, 0
        %v903 = vsel %vm714, %v878, 0
        %v906 = vsel %vm714, %v879, 0
        %v909 = vsel %vm714, %v880, 0
        %v912 = vsel %vm714, %v881, 0
        %v915 = vsel %vm714, %v882, 0
        %v918 = vsel %vm714, %v883, 0
        %v921 = vsel %vm714, %v884, 0
        %v924 = vsel %vm714, %v885, 0
        %v927 = vsel %vm714, %v886, 0
        %v930 = vsel %vm714, %v887, 0
        %v933 = vsel %vm714, %v888, 0
        %v936 = vsel %vm714, %v889, 0
        %v939 = vsel %vm714, %v890, 0
        %941 = vmatprep.subr.mxu0 %v892
        %942 = vmatpush1.msra.mxu0 %v891
        %943 = vmatprep.subr.mxu0 0.0
        %944 = vmatpush1.msra.mxu0 0.0
        %945 = vmatprep.subr.mxu0 0.0
        %946 = vmatpush1.msra.mxu0 0.0
        %947 = vmatprep.subr.mxu0 0.0
        %948 = vmatpush1.msra.mxu0 0.0
        %949 = vmatprep.subr.mxu0 0.0
        %950 = vmatpush1.msra.mxu0 0.0
        %951 = vmatprep.subr.mxu0 0.0
        %952 = vmatpush1.msra.mxu0 0.0
        %953 = vmatprep.subr.mxu0 0.0
        %954 = vmatpush1.msra.mxu0 0.0
        %955 = vmatprep.subr.mxu0 0.0
        %956 = vmatpush1.msra.mxu0 0.0
        %957 = vmatprep.subr.mxu0 0.0
        %958 = vmatpush1.msra.mxu0 0.0
        %959 = vmatprep.subr.mxu0 0.0
        %960 = vmatpush1.msra.mxu0 0.0
        %961 = vmatprep.subr.mxu0 0.0
        %962 = vmatpush1.msra.mxu0 0.0
        %963 = vmatprep.subr.mxu0 0.0
        %964 = vmatpush1.msra.mxu0 0.0
        %965 = vmatprep.subr.mxu0 0.0
        %966 = vmatpush1.msra.mxu0 0.0
        %967 = vmatprep.subr.mxu0 0.0
        %968 = vmatpush1.msra.mxu0 0.0
        %969 = vmatprep.subr.mxu0 0.0
        %970 = vmatpush1.msra.mxu0 0.0
        %971 = vmatprep.subr.mxu0 0.0
        %972 = vmatpush1.msra.mxu0 0.0
        %973 = vmatprep.subr.mxu0 0.0
        %974 = vmatpush1.msra.mxu0 0.0
        %975 = vmatprep.subr.mxu0 0.0
        %976 = vmatpush1.msra.mxu0 0.0
        %977 = vmatprep.subr.mxu0 0.0
        %978 = vmatpush1.msra.mxu0 0.0
        %979 = vmatprep.subr.mxu0 0.0
        %980 = vmatpush1.msra.mxu0 0.0
        %981 = vmatprep.subr.mxu0 0.0
        %982 = vmatpush1.msra.mxu0 0.0
        %983 = vmatprep.subr.mxu0 0.0
        %984 = vmatpush1.msra.mxu0 0.0
        %985 = vmatprep.subr.mxu0 0.0
        %986 = vmatpush1.msra.mxu0 0.0
        %987 = vmatprep.subr.mxu0 0.0
        %988 = vmatpush1.msra.mxu0 0.0
        %989 = vmatprep.subr.mxu0 0.0
        %990 = vmatpush1.msra.mxu0 0.0
        %991 = vmatprep.subr.mxu0 0.0
        %992 = vmatpush1.msra.mxu0 0.0
        %993 = vmatprep.subr.mxu0 0.0
        %994 = vmatpush1.msra.mxu0 0.0
        %995 = vmatprep.subr.mxu0 0.0
        %996 = vmatpush1.msra.mxu0 0.0
        %997 = vmatprep.subr.mxu0 0.0
        %998 = vmatpush1.msra.mxu0 0.0
        %999 = vmatprep.subr.mxu0 0.0
        %1000 = vmatpush1.msra.mxu0 0.0
        %1001 = vmatprep.subr.mxu0 0.0
        %1002 = vmatpush1.msra.mxu0 0.0
        %1003 = vmatprep.subr.mxu0 0.0
        %1004 = vmatpush1.msra.mxu0 0.0
        %1005 = vmatprep.mubr.f32.mxu0 0.0
        %1006 = vmatmul.mubr.f32.gmra.mrb[0].mxu0 %v894
        %v1007 = vpop.f32.mrb[0].mxu0
        %v1008 = vadd.f32 0.0, %v1007
        %v1009 = vpop.f32.mrb[0].mxu0
        %v1010 = vadd.f32 0.0, %v1009
        %1011 = vmatprep.mubr.f32.mxu0 0.0
        %1012 = vmatmul.mubr.f32.gmra.mrb[0].mxu0 %v897
        %v1013 = vpop.f32.mrb[0].mxu0
        %v1014 = vadd.f32 0.0, %v1013
        %v1015 = vpop.f32.mrb[0].mxu0
        %v1016 = vadd.f32 0.0, %v1015
        %1017 = vmatprep.mubr.f32.mxu0 0.0
        %1018 = vmatmul.mubr.f32.gmra.mrb[0].mxu0 %v900
        %v1019 = vpop.f32.mrb[0].mxu0
        %v1020 = vadd.f32 0.0, %v1019
        %v1021 = vpop.f32.mrb[0].mxu0
        %v1022 = vadd.f32 0.0, %v1021
        %1023 = vmatprep.mubr.f32.mxu0 0.0
        %1024 = vmatmul.mubr.f32.gmra.mrb[0].mxu0 %v903
        %v1025 = vpop.f32.mrb[0].mxu0
        %v1026 = vadd.f32 0.0, %v1025
        %v1027 = vpop.f32.mrb[0].mxu0
        %v1028 = vadd.f32 0.0, %v1027
        %1029 = vmatprep.mubr.f32.mxu0 0.0
        %1030 = vmatmul.mubr.f32.gmra.mrb[0].mxu0 %v906
        %v1031 = vpop.f32.mrb[0].mxu0
        %v1032 = vadd.f32 0.0, %v1031
        %v1033 = vpop.f32.mrb[0].mxu0
        %v1034 = vadd.f32 0.0, %v1033
        %1035 = vmatprep.mubr.f32.mxu0 0.0
        %1036 = vmatmul.mubr.f32.gmra.mrb[0].mxu0 %v909
        %v1037 = vpop.f32.mrb[0].mxu0
        %v1038 = vadd.f32 0.0, %v1037
        %v1039 = vpop.f32.mrb[0].mxu0
        %v1040 = vadd.f32 0.0, %v1039
        %1041 = vmatprep.mubr.f32.mxu0 0.0
        %1042 = vmatmul.mubr.f32.gmra.mrb[0].mxu0 %v912
        %v1043 = vpop.f32.mrb[0].mxu0
        %v1044 = vadd.f32 0.0, %v1043
        %v1045 = vpop.f32.mrb[0].mxu0
        %v1046 = vadd.f32 0.0, %v1045
        %1047 = vmatprep.mubr.f32.mxu0 0.0
        %1048 = vmatmul.mubr.f32.gmra.mrb[0].mxu0 %v915
        %v1049 = vpop.f32.mrb[0].mxu0
        %v1050 = vadd.f32 0.0, %v1049
        %v1051 = vpop.f32.mrb[0].mxu0
        %v1052 = vadd.f32 0.0, %v1051
        %1053 = vmatprep.mubr.f32.mxu0 0.0
        %1054 = vmatmul.mubr.f32.gmra.mrb[0].mxu0 %v918
        %v1055 = vpop.f32.mrb[0].mxu0
        %v1056 = vadd.f32 0.0, %v1055
        %v1057 = vpop.f32.mrb[0].mxu0
        %v1058 = vadd.f32 0.0, %v1057
        %1059 = vmatprep.mubr.f32.mxu0 0.0
        %1060 = vmatmul.mubr.f32.gmra.mrb[0].mxu0 %v921
        %v1061 = vpop.f32.mrb[0].mxu0
        %v1062 = vadd.f32 0.0, %v1061
        %v1063 = vpop.f32.mrb[0].mxu0
        %v1064 = vadd.f32 0.0, %v1063
        %1065 = vmatprep.mubr.f32.mxu0 0.0
        %1066 = vmatmul.mubr.f32.gmra.mrb[0].mxu0 %v924
        %v1067 = vpop.f32.mrb[0].mxu0
        %v1068 = vadd.f32 0.0, %v1067
        %v1069 = vpop.f32.mrb[0].mxu0
        %v1070 = vadd.f32 0.0, %v1069
        %1071 = vmatprep.mubr.f32.mxu0 0.0
        %1072 = vmatmul.mubr.f32.gmra.mrb[0].mxu0 %v927
        %v1073 = vpop.f32.mrb[0].mxu0
        %v1074 = vadd.f32 0.0, %v1073
        %v1075 = vpop.f32.mrb[0].mxu0
        %v1076 = vadd.f32 0.0, %v1075
        %1077 = vmatprep.mubr.f32.mxu0 0.0
        %1078 = vmatmul.mubr.f32.gmra.mrb[0].mxu0 %v930
        %v1079 = vpop.f32.mrb[0].mxu0
        %v1080 = vadd.f32 0.0, %v1079
        %v1081 = vpop.f32.mrb[0].mxu0
        %v1082 = vadd.f32 0.0, %v1081
        %1083 = vmatprep.mubr.f32.mxu0 0.0
        %1084 = vmatmul.mubr.f32.gmra.mrb[0].mxu0 %v933
        %v1085 = vpop.f32.mrb[0].mxu0
        %v1086 = vadd.f32 0.0, %v1085
        %v1087 = vpop.f32.mrb[0].mxu0
        %v1088 = vadd.f32 0.0, %v1087
        %1089 = vmatprep.mubr.f32.mxu0 0.0
        %1090 = vmatmul.mubr.f32.gmra.mrb[0].mxu0 %v936
        %v1091 = vpop.f32.mrb[0].mxu0
        %v1092 = vadd.f32 0.0, %v1091
        %v1093 = vpop.f32.mrb[0].mxu0
        %v1094 = vadd.f32 0.0, %v1093
        %1095 = vmatprep.mubr.f32.mxu0 0.0
        %1096 = vmatmul.mubr.f32.gmra.mrb[0].mxu0 %v939
        %v1097 = vpop.f32.mrb[0].mxu0
        %v1098 = vadd.f32 0.0, %v1097
        %v1099 = vpop.f32.mrb[0].mxu0
        %v1100 = vadd.f32 0.0, %v1099
        %1101 = vdwg.mxu0
        %v1102 = vmul.f32 %v1008, %v500
        %v1103 = vmul.f32 %v1010, %v501
        %v1104 = vmul.f32 %v1014, %v502
        %v1105 = vmul.f32 %v1016, %v503
        %v1106 = vmul.f32 %v1020, %v504
        %v1107 = vmul.f32 %v1022, %v505
        %v1108 = vmul.f32 %v1026, %v506
        %v1109 = vmul.f32 %v1028, %v507
        %v1110 = vmul.f32 %v1032, %v508
        %v1111 = vmul.f32 %v1034, %v509
        %v1112 = vmul.f32 %v1038, %v510
        %v1113 = vmul.f32 %v1040, %v511
        %v1114 = vmul.f32 %v1044, %v512
        %v1115 = vmul.f32 %v1046, %v513
        %v1116 = vmul.f32 %v1050, %v514
        %v1117 = vmul.f32 %v1052, %v515
        %v1118 = vmul.f32 %v1056, %v516
        %v1119 = vmul.f32 %v1058, %v517
        %v1120 = vmul.f32 %v1062, %v518
        %v1121 = vmul.f32 %v1064, %v519
        %v1122 = vmul.f32 %v1068, %v520
        %v1123 = vmul.f32 %v1070, %v521
        %v1124 = vmul.f32 %v1074, %v522
        %v1125 = vmul.f32 %v1076, %v523
        %v1126 = vmul.f32 %v1080, %v524
        %v1127 = vmul.f32 %v1082, %v525
        %v1128 = vmul.f32 %v1086, %v526
        %v1129 = vmul.f32 %v1088, %v527
        %v1130 = vmul.f32 %v1092, %v528
        %v1131 = vmul.f32 %v1094, %v529
        %v1132 = vmul.f32 %v1098, %v530
        %v1133 = vmul.f32 %v1100, %v531
        %1134 = vrot.lane.b32.xlu0 %v1102, 32
        %v1135 = vpop.permute.xlu0 %1134
        %1136 = vrot.lane.b32.xlu0 %v1104, 32
        %v1137 = vpop.permute.xlu0 %1136
        %1138 = vrot.lane.b32.xlu0 %v1106, 32
        %v1139 = vpop.permute.xlu0 %1138
        %1140 = vrot.lane.b32.xlu0 %v1108, 32
        %v1141 = vpop.permute.xlu0 %1140
        %1142 = vrot.lane.b32.xlu0 %v1110, 32
        %v1143 = vpop.permute.xlu0 %1142
        %1144 = vrot.lane.b32.xlu0 %v1112, 32
        %v1145 = vpop.permute.xlu0 %1144
        %1146 = vrot.lane.b32.xlu0 %v1114, 32
        %v1147 = vpop.permute.xlu0 %1146
        %1148 = vrot.lane.b32.xlu0 %v1116, 32
        %v1149 = vpop.permute.xlu0 %1148
        %1150 = vrot.lane.b32.xlu0 %v1118, 32
        %v1151 = vpop.permute.xlu0 %1150
        %1152 = vrot.lane.b32.xlu0 %v1120, 32
        %v1153 = vpop.permute.xlu0 %1152
        %1154 = vrot.lane.b32.xlu0 %v1122, 32
        %v1155 = vpop.permute.xlu0 %1154
        %1156 = vrot.lane.b32.xlu0 %v1124, 32
        %v1157 = vpop.permute.xlu0 %1156
        %1158 = vrot.lane.b32.xlu0 %v1126, 32
        %v1159 = vpop.permute.xlu0 %1158
        %1160 = vrot.lane.b32.xlu0 %v1128, 32
        %v1161 = vpop.permute.xlu0 %1160
        %1162 = vrot.lane.b32.xlu0 %v1130, 32
        %v1163 = vpop.permute.xlu0 %1162
        %1164 = vrot.lane.b32.xlu0 %v1132, 32
        %v1165 = vpop.permute.xlu0 %1164
        %1166 = vrot.lane.b32.xlu0 %v1103, 32
        %v1167 = vpop.permute.xlu0 %1166
        %1168 = vrot.lane.b32.xlu0 %v1105, 32
        %v1169 = vpop.permute.xlu0 %1168
        %1170 = vrot.lane.b32.xlu0 %v1107, 32
        %v1171 = vpop.permute.xlu0 %1170
        %1172 = vrot.lane.b32.xlu0 %v1109, 32
        %v1173 = vpop.permute.xlu0 %1172
        %1174 = vrot.lane.b32.xlu0 %v1111, 32
        %v1175 = vpop.permute.xlu0 %1174
        %1176 = vrot.lane.b32.xlu0 %v1113, 32
        %v1177 = vpop.permute.xlu0 %1176
        %1178 = vrot.lane.b32.xlu0 %v1115, 32
        %v1179 = vpop.permute.xlu0 %1178
        %1180 = vrot.lane.b32.xlu0 %v1117, 32
        %v1181 = vpop.permute.xlu0 %1180
        %1182 = vrot.lane.b32.xlu0 %v1119, 32
        %v1183 = vpop.permute.xlu0 %1182
        %1184 = vrot.lane.b32.xlu0 %v1121, 32
        %v1185 = vpop.permute.xlu0 %1184
        %1186 = vrot.lane.b32.xlu0 %v1123, 32
        %v1187 = vpop.permute.xlu0 %1186
        %1188 = vrot.lane.b32.xlu0 %v1125, 32
        %v1189 = vpop.permute.xlu0 %1188
        %1190 = vrot.lane.b32.xlu0 %v1127, 32
        %v1191 = vpop.permute.xlu0 %1190
        %1192 = vrot.lane.b32.xlu0 %v1129, 32
        %v1193 = vpop.permute.xlu0 %1192
        %1194 = vrot.lane.b32.xlu0 %v1131, 32
        %v1195 = vpop.permute.xlu0 %1194
        %1196 = vrot.lane.b32.xlu0 %v1133, 32
        %v1197 = vpop.permute.xlu0 %1196
        %v1198 = vlaneseq
        %v1199 = vand.u32 %v1198, 127
        %vm1200 = vcmp.lt.s32.totalorder %v1199, 32
        %v1201 = vsel %vm1200, %v1135, %v1167
        %v1202 = vsel %vm1200, %v1137, %v1169
        %v1203 = vsel %vm1200, %v1139, %v1171
        %v1204 = vsel %vm1200, %v1141, %v1173
        %v1205 = vsel %vm1200, %v1143, %v1175
        %v1206 = vsel %vm1200, %v1145, %v1177
        %v1207 = vsel %vm1200, %v1147, %v1179
        %v1208 = vsel %vm1200, %v1149, %v1181
        %v1209 = vsel %vm1200, %v1151, %v1183
        %v1210 = vsel %vm1200, %v1153, %v1185
        %v1211 = vsel %vm1200, %v1155, %v1187
        %v1212 = vsel %vm1200, %v1157, %v1189
        %v1213 = vsel %vm1200, %v1159, %v1191
        %v1214 = vsel %vm1200, %v1161, %v1193
        %v1215 = vsel %vm1200, %v1163, %v1195
        %v1216 = vsel %vm1200, %v1165, %v1197
        %v1217 = vsel %vm1200, %v1167, %v1135
        %v1218 = vsel %vm1200, %v1169, %v1137
        %v1219 = vsel %vm1200, %v1171, %v1139
        %v1220 = vsel %vm1200, %v1173, %v1141
        %v1221 = vsel %vm1200, %v1175, %v1143
        %v1222 = vsel %vm1200, %v1177, %v1145
        %v1223 = vsel %vm1200, %v1179, %v1147
        %v1224 = vsel %vm1200, %v1181, %v1149
        %v1225 = vsel %vm1200, %v1183, %v1151
        %v1226 = vsel %vm1200, %v1185, %v1153
        %v1227 = vsel %vm1200, %v1187, %v1155
        %v1228 = vsel %vm1200, %v1189, %v1157
        %v1229 = vsel %vm1200, %v1191, %v1159
        %v1230 = vsel %vm1200, %v1193, %v1161
        %v1231 = vsel %vm1200, %v1195, %v1163
        %v1232 = vsel %vm1200, %v1197, %v1165
        %v1233 = vadd.f32 %v1102, %v1217
        %v1234 = vadd.f32 %v1103, %v1201
        %v1235 = vadd.f32 %v1104, %v1218
        %v1236 = vadd.f32 %v1105, %v1202
        %v1237 = vadd.f32 %v1106, %v1219
        %v1238 = vadd.f32 %v1107, %v1203
        %v1239 = vadd.f32 %v1108, %v1220
        %v1240 = vadd.f32 %v1109, %v1204
        %v1241 = vadd.f32 %v1110, %v1221
        %v1242 = vadd.f32 %v1111, %v1205
        %v1243 = vadd.f32 %v1112, %v1222
        %v1244 = vadd.f32 %v1113, %v1206
        %v1245 = vadd.f32 %v1114, %v1223
        %v1246 = vadd.f32 %v1115, %v1207
        %v1247 = vadd.f32 %v1116, %v1224
        %v1248 = vadd.f32 %v1117, %v1208
        %v1249 = vadd.f32 %v1118, %v1225
        %v1250 = vadd.f32 %v1119, %v1209
        %v1251 = vadd.f32 %v1120, %v1226
        %v1252 = vadd.f32 %v1121, %v1210
        %v1253 = vadd.f32 %v1122, %v1227
        %v1254 = vadd.f32 %v1123, %v1211
        %v1255 = vadd.f32 %v1124, %v1228
        %v1256 = vadd.f32 %v1125, %v1212
        %v1257 = vadd.f32 %v1126, %v1229
        %v1258 = vadd.f32 %v1127, %v1213
        %v1259 = vadd.f32 %v1128, %v1230
        %v1260 = vadd.f32 %v1129, %v1214
        %v1261 = vadd.f32 %v1130, %v1231
        %v1262 = vadd.f32 %v1131, %v1215
        %v1263 = vadd.f32 %v1132, %v1232
        %v1264 = vadd.f32 %v1133, %v1216
        %1265 = vrot.lane.b32.xlu0 %v1233, 64
        %v1266 = vpop.permute.xlu0 %1265
        %1267 = vrot.lane.b32.xlu0 %v1235, 64
        %v1268 = vpop.permute.xlu0 %1267
        %1269 = vrot.lane.b32.xlu0 %v1237, 64
        %v1270 = vpop.permute.xlu0 %1269
        %1271 = vrot.lane.b32.xlu0 %v1239, 64
        %v1272 = vpop.permute.xlu0 %1271
        %1273 = vrot.lane.b32.xlu0 %v1241, 64
        %v1274 = vpop.permute.xlu0 %1273
        %1275 = vrot.lane.b32.xlu0 %v1243, 64
        %v1276 = vpop.permute.xlu0 %1275
        %1277 = vrot.lane.b32.xlu0 %v1245, 64
        %v1278 = vpop.permute.xlu0 %1277
        %1279 = vrot.lane.b32.xlu0 %v1247, 64
        %v1280 = vpop.permute.xlu0 %1279
        %1281 = vrot.lane.b32.xlu0 %v1249, 64
        %v1282 = vpop.permute.xlu0 %1281
        %1283 = vrot.lane.b32.xlu0 %v1251, 64
        %v1284 = vpop.permute.xlu0 %1283
        %1285 = vrot.lane.b32.xlu0 %v1253, 64
        %v1286 = vpop.permute.xlu0 %1285
        %1287 = vrot.lane.b32.xlu0 %v1255, 64
        %v1288 = vpop.permute.xlu0 %1287
        %1289 = vrot.lane.b32.xlu0 %v1257, 64
        %v1290 = vpop.permute.xlu0 %1289
        %1291 = vrot.lane.b32.xlu0 %v1259, 64
        %v1292 = vpop.permute.xlu0 %1291
        %1293 = vrot.lane.b32.xlu0 %v1261, 64
        %v1294 = vpop.permute.xlu0 %1293
        %1295 = vrot.lane.b32.xlu0 %v1263, 64
        %v1296 = vpop.permute.xlu0 %1295
        %1297 = vrot.lane.b32.xlu0 %v1234, 64
        %v1298 = vpop.permute.xlu0 %1297
        %1299 = vrot.lane.b32.xlu0 %v1236, 64
        %v1300 = vpop.permute.xlu0 %1299
        %1301 = vrot.lane.b32.xlu0 %v1238, 64
        %v1302 = vpop.permute.xlu0 %1301
        %1303 = vrot.lane.b32.xlu0 %v1240, 64
        %v1304 = vpop.permute.xlu0 %1303
        %1305 = vrot.lane.b32.xlu0 %v1242, 64
        %v1306 = vpop.permute.xlu0 %1305
        %1307 = vrot.lane.b32.xlu0 %v1244, 64
        %v1308 = vpop.permute.xlu0 %1307
        %1309 = vrot.lane.b32.xlu0 %v1246, 64
        %v1310 = vpop.permute.xlu0 %1309
        %1311 = vrot.lane.b32.xlu0 %v1248, 64
        %v1312 = vpop.permute.xlu0 %1311
        %1313 = vrot.lane.b32.xlu0 %v1250, 64
        %v1314 = vpop.permute.xlu0 %1313
        %1315 = vrot.lane.b32.xlu0 %v1252, 64
        %v1316 = vpop.permute.xlu0 %1315
        %1317 = vrot.lane.b32.xlu0 %v1254, 64
        %v1318 = vpop.permute.xlu0 %1317
        %1319 = vrot.lane.b32.xlu0 %v1256, 64
        %v1320 = vpop.permute.xlu0 %1319
        %1321 = vrot.lane.b32.xlu0 %v1258, 64
        %v1322 = vpop.permute.xlu0 %1321
        %1323 = vrot.lane.b32.xlu0 %v1260, 64
        %v1324 = vpop.permute.xlu0 %1323
        %1325 = vrot.lane.b32.xlu0 %v1262, 64
        %v1326 = vpop.permute.xlu0 %1325
        %1327 = vrot.lane.b32.xlu0 %v1264, 64
        %v1328 = vpop.permute.xlu0 %1327
        %vm1329 = vcmp.lt.s32.totalorder %v1199, 64
        %v1330 = vsel %vm1329, %v1266, %v1298
        %v1331 = vsel %vm1329, %v1268, %v1300
        %v1332 = vsel %vm1329, %v1270, %v1302
        %v1333 = vsel %vm1329, %v1272, %v1304
        %v1334 = vsel %vm1329, %v1274, %v1306
        %v1335 = vsel %vm1329, %v1276, %v1308
        %v1336 = vsel %vm1329, %v1278, %v1310
        %v1337 = vsel %vm1329, %v1280, %v1312
        %v1338 = vsel %vm1329, %v1282, %v1314
        %v1339 = vsel %vm1329, %v1284, %v1316
        %v1340 = vsel %vm1329, %v1286, %v1318
        %v1341 = vsel %vm1329, %v1288, %v1320
        %v1342 = vsel %vm1329, %v1290, %v1322
        %v1343 = vsel %vm1329, %v1292, %v1324
        %v1344 = vsel %vm1329, %v1294, %v1326
        %v1345 = vsel %vm1329, %v1296, %v1328
        %v1346 = vsel %vm1329, %v1298, %v1266
        %v1347 = vsel %vm1329, %v1300, %v1268
        %v1348 = vsel %vm1329, %v1302, %v1270
        %v1349 = vsel %vm1329, %v1304, %v1272
        %v1350 = vsel %vm1329, %v1306, %v1274
        %v1351 = vsel %vm1329, %v1308, %v1276
        %v1352 = vsel %vm1329, %v1310, %v1278
        %v1353 = vsel %vm1329, %v1312, %v1280
        %v1354 = vsel %vm1329, %v1314, %v1282
        %v1355 = vsel %vm1329, %v1316, %v1284
        %v1356 = vsel %vm1329, %v1318, %v1286
        %v1357 = vsel %vm1329, %v1320, %v1288
        %v1358 = vsel %vm1329, %v1322, %v1290
        %v1359 = vsel %vm1329, %v1324, %v1292
        %v1360 = vsel %vm1329, %v1326, %v1294
        %v1361 = vsel %vm1329, %v1328, %v1296
        %v1362 = vadd.f32 %v1233, %v1346
        %v1363 = vadd.f32 %v1234, %v1330
        %v1364 = vadd.f32 %v1235, %v1347
        %v1365 = vadd.f32 %v1236, %v1331
        %v1366 = vadd.f32 %v1237, %v1348
        %v1367 = vadd.f32 %v1238, %v1332
        %v1368 = vadd.f32 %v1239, %v1349
        %v1369 = vadd.f32 %v1240, %v1333
        %v1370 = vadd.f32 %v1241, %v1350
        %v1371 = vadd.f32 %v1242, %v1334
        %v1372 = vadd.f32 %v1243, %v1351
        %v1373 = vadd.f32 %v1244, %v1335
        %v1374 = vadd.f32 %v1245, %v1352
        %v1375 = vadd.f32 %v1246, %v1336
        %v1376 = vadd.f32 %v1247, %v1353
        %v1377 = vadd.f32 %v1248, %v1337
        %v1378 = vadd.f32 %v1249, %v1354
        %v1379 = vadd.f32 %v1250, %v1338
        %v1380 = vadd.f32 %v1251, %v1355
        %v1381 = vadd.f32 %v1252, %v1339
        %v1382 = vadd.f32 %v1253, %v1356
        %v1383 = vadd.f32 %v1254, %v1340
        %v1384 = vadd.f32 %v1255, %v1357
        %v1385 = vadd.f32 %v1256, %v1341
        %v1386 = vadd.f32 %v1257, %v1358
        %v1387 = vadd.f32 %v1258, %v1342
        %v1388 = vadd.f32 %v1259, %v1359
        %v1389 = vadd.f32 %v1260, %v1343
        %v1390 = vadd.f32 %v1261, %v1360
        %v1391 = vadd.f32 %v1262, %v1344
        %v1392 = vadd.f32 %v1263, %v1361
        %v1393 = vadd.f32 %v1264, %v1345
        %v1394 = vadd.f32 %v1362, %v1363
        %v1395 = vadd.f32 %v1364, %v1365
        %v1396 = vadd.f32 %v1366, %v1367
        %v1397 = vadd.f32 %v1368, %v1369
        %v1398 = vadd.f32 %v1370, %v1371
        %v1399 = vadd.f32 %v1372, %v1373
        %v1400 = vadd.f32 %v1374, %v1375
        %v1401 = vadd.f32 %v1376, %v1377
        %v1402 = vadd.f32 %v1378, %v1379
        %v1403 = vadd.f32 %v1380, %v1381
        %v1404 = vadd.f32 %v1382, %v1383
        %v1405 = vadd.f32 %v1384, %v1385
        %v1406 = vadd.f32 %v1386, %v1387
        %v1407 = vadd.f32 %v1388, %v1389
        %v1408 = vadd.f32 %v1390, %v1391
        %v1409 = vadd.f32 %v1392, %v1393
        %vm1410 = vcmask 261120
        %1411 = vst.msk [vmem:[%s245] sm:$0xff] %vm1410, %v1394
        %1412 = vst.msk [vmem:[%s245 + $0x8] sm:$0xff] %vm1410, %v1395
        %1413 = vst.msk [vmem:[%s245 + $0x10] sm:$0xff] %vm1410, %v1396
        %1414 = vst.msk [vmem:[%s245 + $0x18] sm:$0xff] %vm1410, %v1397
        %1415 = vst.msk [vmem:[%s245 + $0x20] sm:$0xff] %vm1410, %v1398
        %1416 = vst.msk [vmem:[%s245 + $0x28] sm:$0xff] %vm1410, %v1399
        %1417 = vst.msk [vmem:[%s245 + $0x30] sm:$0xff] %vm1410, %v1400
        %1418 = vst.msk [vmem:[%s245 + $0x38] sm:$0xff] %vm1410, %v1401
        %1419 = vst.msk [vmem:[%s245 + $0x40] sm:$0xff] %vm1410, %v1402
        %1420 = vst.msk [vmem:[%s245 + $0x48] sm:$0xff] %vm1410, %v1403
        %1421 = vst.msk [vmem:[%s245 + $0x50] sm:$0xff] %vm1410, %v1404
        %1422 = vst.msk [vmem:[%s245 + $0x58] sm:$0xff] %vm1410, %v1405
        %1423 = vst.msk [vmem:[%s245 + $0x60] sm:$0xff] %vm1410, %v1406
        %1424 = vst.msk [vmem:[%s245 + $0x68] sm:$0xff] %vm1410, %v1407
        %1425 = vst.msk [vmem:[%s245 + $0x70] sm:$0xff] %vm1410, %v1408
        %1426 = vst.msk [vmem:[%s245 + $0x78] sm:$0xff] %vm1410, %v1409
        %s1427 = smul.u32 16, %s19
        %p1428 = scmp.lt.s32.totalorder %s1427, 47
        %s1429 = scalar_select %p1428, %s1427, 47
        %s1430 = smul.addr %s1429, 8
        %s1431 = scalar_lea.vmem %s5, %s1430
        // Predicated region
        $region45: #{tpu_custom_call.1} parent=39 // pred_check
          %p1432 = pneg %p147
        $region46: #{tpu_custom_call.1} parent=39 // pred_check_branch
          %1434 = sbr.rel (%p1432) target = $region48
        $region47: #{tpu_custom_call.1} parent=39 // pred_region
          %s1435 = smul.u32 16, %s19
        $region48: #{tpu_custom_call.1} parent=39 // pred_fallthru
          _
      $region40: #{tpu_custom_call.1} parent=5 // pred_fallthru
        _
      %p1436 = scmp.le.s32.totalorder 2, %s14
      // Predicated region
      $region49: #{tpu_custom_call.1} parent=5 // pred_check
        %p1437 = pneg %p1436
      $region50: #{tpu_custom_call.1} parent=5 // pred_check_branch
        %1439 = sbr.rel (%p1437) target = $region52
      $region51: #{tpu_custom_call.1} parent=5 // pred_region
        %s1440 = ssub.s32 %s14, 2
        // Predicated region
        $region53: #{tpu_custom_call.1} parent=51 // pred_check
          %p1441 = pneg %p153
        $region54: #{tpu_custom_call.1} parent=51 // pred_check_branch
          %1443 = sbr.rel (%p1441) target = $region56
        $region55: #{tpu_custom_call.1} parent=51 // pred_region
          %s1444 = smul.u32 16, %s20
          %p1445 = scmp.lt.s32.totalorder %s1444, 47
          %s1446 = scalar_select %p1445, %s1444, 47
          %s1447 = smul.addr %s1446, 8
          %s1448 = scalar_lea.vmem %s5, %s1447
        $region56: #{tpu_custom_call.1} parent=51 // pred_fallthru
          _
      $region52: #{tpu_custom_call.1} parent=5 // pred_fallthru
        _
    $region6: #{tpu_custom_call.1} parent=1 // loop_footer
      %s18 = sadd.s32 1, %s14
    $region7: #{tpu_custom_call.1} parent=1 // loop_footer_branch
      %13 = sbr.rel target = $region3
    $region8: #{tpu_custom_call.1} parent=1 // loop_exit
      _
    %1449 = vsyncpa [#allocation3], 1
    %s1450 = scalar_lea.sflag [#allocation3], 1
    %1451 = vsyncpa %s1450, 1

</llo_original>
